<compile_context>
chip_gen: v5e
topology: v5e:2x2
jax: 0.10.0
libtpu: 0.0.40
codegen_flags: <defaults>
</compile_context>

<pallas_src>
import jax
import jax.numpy as jnp
from jax.experimental import pallas as pl
from jax.experimental.pallas import tpu as pltpu

_SQRT_2_OVER_PI = 0.7978845608028654        # sqrt(2/pi)
_K1 = _SQRT_2_OVER_PI * 0.044715            # folded constant
_SMALL_FAST_PATH_BYTES = 256 * 1024


def gelu_kernel(x_ref, o_ref):
    # Always compute in f32: kernel is HBM-bound, so the extra VALU/EUP work is
    # free, and bf16 inputs keep halved HBM traffic without bf16 tanh error.
    x = x_ref[...].astype(jnp.float32)
    inner = x * (_SQRT_2_OVER_PI + _K1 * (x * x))
    y = x * (0.5 + 0.5 * jnp.tanh(inner))
    o_ref[...] = y.astype(o_ref.dtype)


def _gelu_jnp(x):
    """Plain-jnp GELU (tanh approx). Used for tiny tensors and ragged tails."""
    xf = x.astype(jnp.float32)
    inner = xf * (_SQRT_2_OVER_PI + _K1 * (xf * xf))
    return (xf * (0.5 + 0.5 * jnp.tanh(inner))).astype(x.dtype)


def _pick_width(n):
    """Choose a lane width W for the (R, W) view of the flattened tensor.

    Returns (W, exact) where exact=True means W divides n (zero-copy reshape).
    """
    # Tier 1: largest multiple of 128 (<= 8192) dividing n.
    hi = min(8192, (n // 128) * 128)
    for w in range(hi, 0, -128):
        if n % w == 0:
            return w, True
    # Tier 2: largest divisor of n in [256, 8192] (exact traffic, slight lane
    # padding only in the last 128-lane group of each row).
    for w in range(min(8192, n), 255, -1):
        if n % w == 0:
            return w, True
    # Tier 3: no usable divisor (near-prime n) -> aligned prefix + jnp tail.
    return 512, False


def _gelu_pallas_2d(x2d, *, target_block_bytes=8 * 1024 * 1024):
    R, W = x2d.shape
    itemsize = jnp.dtype(x2d.dtype).itemsize
    row_bytes = W * itemsize
    # Rows per block capped at ~8 MiB per buffer (multiple of 8).  4x block
    # (double-buffered in + out) = 32 MiB < 40 MiB scoped limit, safe on
    # v5e/v6e (128 MiB VMEM) and v7x (64 MiB per TC).
    br_cap = max(8, (target_block_bytes // row_bytes) // 8 * 8)

    if R <= 8:
        br = R                          # single full-extent block
    else:
        nb = -(-R // br_cap)            # minimum blocks respecting the VMEM cap
        nb = max(nb, 2)                 # keep both v7x TensorCores busy
        if nb < 8 and nb % 2:
            nb += 1                     # even block count -> balanced 2-TC split
        br = min(br_cap, ((-(-R // nb)) + 7) // 8 * 8)
    grid = (pl.cdiv(R, br),)            # ragged last block masked by Pallas

    return pl.pallas_call(
        gelu_kernel,
        out_shape=jax.ShapeDtypeStruct((R, W), x2d.dtype),
        grid_spec=pltpu.PrefetchScalarGridSpec(
            num_scalar_prefetch=0,
            grid=grid,
            in_specs=[pl.BlockSpec((br, W), lambda i: (i, 0))],
            out_specs=pl.BlockSpec((br, W), lambda i: (i, 0)),
        ),
        compiler_params=pltpu.CompilerParams(
            dimension_semantics=("parallel",),
            vmem_limit_bytes=40 * 1024 * 1024,
        ),
    )(x2d)


def gelu(x):
    orig_shape = x.shape
    n = x.size
    if n == 0:
        return x
    itemsize = jnp.dtype(x.dtype).itemsize

    # Small-tensor fast path: pallas_call overhead dominates; let XLA fuse it.
    if n * itemsize <= _SMALL_FAST_PATH_BYTES:
        return _gelu_jnp(x)

    W, exact = _pick_width(n)
    if exact:
        out2d = _gelu_pallas_2d(x.reshape(n // W, W))
        return out2d.reshape(orig_shape)

    # Tier 3: kernel on the aligned prefix, tiny jnp tail, then reassemble.
    # (Prefix slice + concatenate each materialize ~one extra HBM pass; this
    # path is only reached when n has no divisor in [256, 8192].)
    flat = x.reshape(-1)
    n_main = (n // W) * W
    out_main = _gelu_pallas_2d(flat[:n_main].reshape(n_main // W, W)).reshape(-1)
    out_tail = _gelu_jnp(flat[n_main:])
    return jnp.concatenate([out_main, out_tail]).reshape(orig_shape)


def gelu_ref(x):
    # Direct transcription of the PyTorch module (tanh approximation).
    xf = x.astype(jnp.float32)
    c = jnp.sqrt(2.0 / jnp.pi)
    return (0.5 * xf * (1.0 + jnp.tanh(c * (xf + 0.044715 * xf ** 3)))).astype(x.dtype)


if __name__ == "__main__":
    key = jax.random.PRNGKey(0)
    k1, k2, k3, k4, k5 = jax.random.split(key, 5)

    # Module-consistent small shape (batch=2, seq=8, hidden=32): fast path.
    x1 = jax.random.normal(k1, (2, 8, 32), dtype=jnp.float32)
    y1 = gelu(x1)
    jax.block_until_ready(y1)
    assert y1.shape == x1.shape and y1.dtype == x1.dtype
    assert jnp.allclose(y1, gelu_ref(x1), atol=1e-5, rtol=1e-5)

    # Aligned element count: Pallas path, W=8192, balanced 2-block grid.
    x2 = jax.random.normal(k2, (8, 128, 512), dtype=jnp.float32)
    y2 = gelu(x2)
    jax.block_until_ready(y2)
    assert y2.shape == x2.shape and y2.dtype == x2.dtype
    assert jnp.allclose(y2, gelu_ref(x2), atol=1e-5, rtol=1e-5)

    # n not divisible by 128: tier-2 zero-copy divisor layout (no pad, no slice).
    x3 = jax.random.normal(k3, (5, 333, 257), dtype=jnp.float32)
    y3 = gelu(x3)
    jax.block_until_ready(y3)
    assert y3.shape == x3.shape and y3.dtype == x3.dtype
    assert jnp.allclose(y3, gelu_ref(x3), atol=1e-5, rtol=1e-5)

    # bf16: bf16 loads/stores, f32 compute inside the kernel.
    x4 = jax.random.normal(k4, (8, 256, 384), dtype=jnp.bfloat16)
    y4 = gelu(x4)
    jax.block_until_ready(y4)
    assert y4.shape == x4.shape and y4.dtype == jnp.bfloat16
    assert jnp.allclose(y4.astype(jnp.float32), gelu_ref(x4).astype(jnp.float32),
                        atol=1e-2, rtol=1e-2)

    # Prime element count: tier-3 aligned-prefix kernel + tiny jnp tail.
    x5 = jax.random.normal(k5, (131071,), dtype=jnp.float32)
    y5 = gelu(x5)
    jax.block_until_ready(y5)
    assert y5.shape == x5.shape and y5.dtype == x5.dtype
    assert jnp.allclose(y5, gelu_ref(x5), atol=1e-5, rtol=1e-5)

    print("KERNEL_OK")
</pallas_src>

<mosaic_0001>
module attributes {stable_mosaic.version = 11 : i64} {
  func.func @gelu_kernel(%arg0: i32, %arg1: memref<32x8192xf32, #tpu.memory_space<vmem>>, %arg2: memref<32x8192xf32, #tpu.memory_space<vmem>>) attributes {dimension_semantics = [#tpu.dimension_semantics<parallel>], iteration_bounds = array<i64: 2>, scalar_prefetch = 0 : i64, scratch_operands = 0 : i64, tpu.core_type = #tpu.core_type<tc>, window_params = [{transform_indices = @transform_0, window_bounds = array<i64: 32, 8192>}, {transform_indices = @transform_1, window_bounds = array<i64: 32, 8192>}]} {
    %c0 = arith.constant 0 : index
    %c0_0 = arith.constant 0 : index
    %0 = vector.load %arg1[%c0, %c0_0] : memref<32x8192xf32, #tpu.memory_space<vmem>>, vector<32x8192xf32>
    %1 = arith.mulf %0, %0 : vector<32x8192xf32>
    %cst = arith.constant 0.0356774069 : f32
    %2 = vector.broadcast %cst : f32 to vector<32x8192xf32>
    %3 = arith.mulf %2, %1 : vector<32x8192xf32>
    %cst_1 = arith.constant 0.797884583 : f32
    %4 = vector.broadcast %cst_1 : f32 to vector<32x8192xf32>
    %5 = arith.addf %4, %3 : vector<32x8192xf32>
    %6 = arith.mulf %0, %5 : vector<32x8192xf32>
    %7 = math.tanh %6 : vector<32x8192xf32>
    %cst_2 = arith.constant 5.000000e-01 : f32
    %8 = vector.broadcast %cst_2 : f32 to vector<32x8192xf32>
    %9 = arith.mulf %8, %7 : vector<32x8192xf32>
    %cst_3 = arith.constant 5.000000e-01 : f32
    %10 = vector.broadcast %cst_3 : f32 to vector<32x8192xf32>
    %11 = arith.addf %10, %9 : vector<32x8192xf32>
    %12 = arith.mulf %0, %11 : vector<32x8192xf32>
    %c0_4 = arith.constant 0 : index
    %c0_5 = arith.constant 0 : index
    %13 = vector.load %arg2[%c0_4, %c0_5] : memref<32x8192xf32, #tpu.memory_space<vmem>>, vector<32x8192xf32>
    tpu.vector_store %arg2[%c0_4, %c0_5], %12 {strides = array<i32>} : memref<32x8192xf32, #tpu.memory_space<vmem>>, vector<32x8192xf32>,
    return
  }
  func.func @transform_0(%arg0: i32) -> (i32, i32) {
    %c0_i32 = arith.constant 0 : i32
    %c0_i32_0 = arith.constant 0 : i32
    return %arg0, %c0_i32 : i32, i32
  }
  func.func @transform_1(%arg0: i32) -> (i32, i32) {
    %c0_i32 = arith.constant 0 : i32
    %c0_i32_0 = arith.constant 0 : i32
    return %arg0, %c0_i32 : i32, i32
  }
}

</mosaic_0001>

<llo_original>
// kernel: tpu_custom_call.1
$region0: #{tpu_custom_call.1}
  #allocation0 [shape = 'u32[]', space=smem, size = 0x4, offset = 0x4, fixed_abs, tag = 'smem constant byte address 0x4 - core index']
  #allocation1 [shape = 'u32[72,128]{1,0:T(1,128)}', space=vmem, size = 0x9000, scoped, tag = 'internal scratch']
  %s0 = inlined_call_operand.hbm [shape: f32[64,8192], index: 0, kind: input, shape index: {}]
  %s1 = inlined_call_operand.hbm [shape: f32[64,8192], index: 1, kind: output, shape index: {}]
  %s2 = sld [smem:[#allocation0]]
  $region41: #{tpu_custom_call.1} parent=0
    _
  %s4 = ssub.s32 1, %s2
  %s5 = scalar_select 0, %s4, %s2
  $region1: #{tpu_custom_call.1} parent=0
    #allocation2 [shape = 'u8[2097152]{0}', space=vmem, size = 0x200000, scoped, tag = 'input window, operand 0']
    #allocation3 [shape = 's32[2]{0}', space=sflag, size = 0x8, scoped, tag = 'scoped memory for tpu_custom_call.1']
    #allocation4 [shape = 's32[2]{0}', space=sflag, size = 0x8, scoped, tag = 'scoped memory for tpu_custom_call.1']
    #allocation5 [shape = 'u8[2097152]{0}', space=vmem, size = 0x200000, scoped, tag = 'output window, operand 0']
    %6 = vsyncpa [#allocation3], 0
    %s7 = scalar_lea.sflag [#allocation3], 1
    %8 = vsyncpa %s7, 0
    %9 = vsyncpa [#allocation4], 0
    %s10 = scalar_lea.sflag [#allocation4], 1
    %11 = vsyncpa %s10, 0
    loop: start=0, step=1, limit=4
    $region2: #{tpu_custom_call.1} parent=1 // loop_pre_header
      _
    $region3: #{tpu_custom_call.1} parent=1 // loop_header
      %s13 = sphi 0, %s17
      %p14 = scmp.ge.s32.totalorder %s13, 4
      %s23 = sphi 0, %s25
      %s26 = sphi 0, %s23
      %s27 = sphi 0, %s26
      %s43 = sphi 0, %s27
      %s49 = sphi 0, %s51
      %s52 = sphi 0, %s49
      %s53 = sphi 0, %s52
      %s69 = sphi 0, %s53
    $region4: #{tpu_custom_call.1} parent=1 // loop_header_branch
      %16 = sbr.rel (%p14) target = $region8
    $region5: #{tpu_custom_call.1} parent=1 // loop_body
      %s18 = ssub.s32 %s13, 1
      %s19 = ssub.s32 %s13, 2
      %s20 = sadd.s32 %s13, 1
      %s21 = ssub.s32 %s13, %s20
      %p22 = scmp.eq.s32.totalorder %s21, 0
      %s24 = sadd.s32 %s23, 1
      %s25 = scalar_select %p22, %s23, %s24
      %p28 = pneg %p22
      %p29 = scmp.eq.s32.totalorder %s13, 1
      %p30 = por %p28, %p29
      %p31 = scmp.ne.s32.totalorder %s23, %s26
      %p32 = scmp.eq.s32.totalorder %s13, 0
      %p33 = por %p31, %p32
      %p34 = scmp.ne.s32.totalorder %s23, %s26
      %p35 = scmp.eq.s32.totalorder %s18, 1
      %p36 = por %p34, %p35
      %p37 = scmp.ne.s32.totalorder %s26, %s27
      %p38 = scmp.eq.s32.totalorder %s18, 0
      %p39 = por %p37, %p38
      %p40 = scmp.ne.s32.totalorder %s26, %s27
      %p41 = scmp.eq.s32.totalorder %s19, 1
      %p42 = por %p40, %p41
      %p44 = scmp.ne.s32.totalorder %s27, %s43
      %p45 = scmp.eq.s32.totalorder %s19, 0
      %p46 = por %p44, %p45
      %s47 = ssub.s32 %s13, %s20
      %p48 = scmp.eq.s32.totalorder %s47, 0
      %s50 = sadd.s32 %s49, 1
      %s51 = scalar_select %p48, %s49, %s50
      %p54 = pneg %p48
      %p55 = scmp.eq.s32.totalorder %s13, 1
      %p56 = por %p54, %p55
      %p57 = scmp.ne.s32.totalorder %s49, %s52
      %p58 = scmp.eq.s32.totalorder %s13, 0
      %p59 = por %p57, %p58
      %p60 = scmp.ne.s32.totalorder %s49, %s52
      %p61 = scmp.eq.s32.totalorder %s18, 1
      %p62 = por %p60, %p61
      %p63 = scmp.ne.s32.totalorder %s52, %s53
      %p64 = scmp.eq.s32.totalorder %s18, 0
      %p65 = por %p63, %p64
      %p66 = scmp.ne.s32.totalorder %s52, %s53
      %p67 = scmp.eq.s32.totalorder %s19, 1
      %p68 = por %p66, %p67
      %p70 = scmp.ne.s32.totalorder %s53, %s69
      %p71 = scmp.eq.s32.totalorder %s19, 0
      %p72 = por %p70, %p71
      %p73 = scmp.le.s32.totalorder 1, %s13
      %p74 = scmp.lt.s32.totalorder %s13, 3
      %p75 = pnand %p73, %p74
      %p76 = pneg %p75
      // Predicated region
      $region9: #{tpu_custom_call.1} parent=5 // pred_check
        _
      $region10: #{tpu_custom_call.1} parent=5 // pred_check_branch
        %78 = sbr.rel (%p75) target = $region12
      $region11: #{tpu_custom_call.1} parent=5 // pred_region
        %s79 = ssub.s32 %s13, 1
      $region12: #{tpu_custom_call.1} parent=5 // pred_fallthru
        _
      %p80 = scmp.lt.s32.totalorder %s13, 2
      // Predicated region
      $region13: #{tpu_custom_call.1} parent=5 // pred_check
        %p81 = pneg %p80
      $region14: #{tpu_custom_call.1} parent=5 // pred_check_branch
        %83 = sbr.rel (%p81) target = $region16
      $region15: #{tpu_custom_call.1} parent=5 // pred_region
        // Predicated region
        $region17: #{tpu_custom_call.1} parent=15 // pred_check
          %p84 = pneg %p33
        $region18: #{tpu_custom_call.1} parent=15 // pred_check_branch
          %86 = sbr.rel (%p84) target = $region20
        $region19: #{tpu_custom_call.1} parent=15 // pred_region
          %s87 = sand.u32 %s23, 1
          %s88 = scalar_lea.sflag [#allocation3], %s87
          %s89 = sand.u32 %s23, 1
          %s90 = smul.addr %s89, 2048
          %s91 = scalar_lea.vmem [#allocation2], %s90
          %s92 = smul.u32 4, %s13
          %94 = vsyncadd %s88, 0
          %s95 = smul.addr %s92, 64
          %s96 = smul.addr %s95, 8
          %s97 = scalar_lea.hbm %s0, %s96
          %s98 = sshll.u32 %s97, 4
          %s99 = int_to_ptr.hbm [resolvable:$true] %s98
          %s100 = sshll.u32 %s91, 4
          %s101 = int_to_ptr.vmem [resolvable:$true] %s100
          %106 = dma.hbm_to_vmem [thread:$0]  %s99, 32768, %s101, %s88, 8192, 8192, 512
        $region20: #{tpu_custom_call.1} parent=15 // pred_fallthru
          _
      $region16: #{tpu_custom_call.1} parent=5 // pred_fallthru
        _
      %p107 = scmp.le.s32.totalorder 1, %s13
      %p108 = scmp.lt.s32.totalorder %s13, 3
      %p109 = pnand %p107, %p108
      %p110 = pneg %p109
      // Predicated region
      $region21: #{tpu_custom_call.1} parent=5 // pred_check
        _
      $region22: #{tpu_custom_call.1} parent=5 // pred_check_branch
        %112 = sbr.rel (%p109) target = $region24
      $region23: #{tpu_custom_call.1} parent=5 // pred_region
        %s113 = ssub.s32 %s13, 1
        %s114 = sand.u32 %s26, 1
        %s115 = scalar_lea.sflag [#allocation3], %s114
        %s116 = sand.u32 %s26, 1
        %s117 = smul.addr %s116, 2048
        %s118 = scalar_lea.vmem [#allocation2], %s117
        // Predicated region
        $region25: #{tpu_custom_call.1} parent=23 // pred_check
          %p119 = pneg %p39
        $region26: #{tpu_custom_call.1} parent=23 // pred_check_branch
          %121 = sbr.rel (%p119) target = $region28
        $region27: #{tpu_custom_call.1} parent=23 // pred_region
          %123 = dma.done %s115, 32768
        $region28: #{tpu_custom_call.1} parent=23 // pred_fallthru
          _
        %s124 = sand.u32 %s26, 1
        %s125 = scalar_lea.sflag [#allocation3], %s124
        %s126 = sand.u32 %s26, 1
        %s127 = smul.addr %s126, 2048
        %s128 = scalar_lea.vmem [#allocation2], %s127
        %p129 = pneg %p39
        %p130 = pneg %p36
        %p131 = pneg %p65
        %p132 = pneg %p62
        %s133 = sand.u32 %s52, 1
        %s134 = scalar_lea.sflag [#allocation4], %s133
        %s135 = sand.u32 %s52, 1
        %s136 = smul.addr %s135, 2048
        %s137 = scalar_lea.vmem [#allocation5], %s136
        %s138 = smul.u32 4, %s18
        %s139 = smul.u32 4, %s18
        %v140 = vld [vmem:[%s118] sm:$0xff]
        %v141 = vld [vmem:[%s118 + $0x8] sm:$0xff]
        %v142 = vld [vmem:[%s118 + $0x10] sm:$0xff]
        %v143 = vld [vmem:[%s118 + $0x18] sm:$0xff]
        %v144 = vld [vmem:[%s118 + $0x20] sm:$0xff]
        %v145 = vld [vmem:[%s118 + $0x28] sm:$0xff]
        %v146 = vld [vmem:[%s118 + $0x30] sm:$0xff]
        %v147 = vld [vmem:[%s118 + $0x38] sm:$0xff]
        %v148 = vld [vmem:[%s118 + $0x40] sm:$0xff]
        %v149 = vld [vmem:[%s118 + $0x48] sm:$0xff]
        %v150 = vld [vmem:[%s118 + $0x50] sm:$0xff]
        %v151 = vld [vmem:[%s118 + $0x58] sm:$0xff]
        %v152 = vld [vmem:[%s118 + $0x60] sm:$0xff]
        %v153 = vld [vmem:[%s118 + $0x68] sm:$0xff]
        %v154 = vld [vmem:[%s118 + $0x70] sm:$0xff]
        %v155 = vld [vmem:[%s118 + $0x78] sm:$0xff]
        %v156 = vld [vmem:[%s118 + $0x80] sm:$0xff]
        %v157 = vld [vmem:[%s118 + $0x88] sm:$0xff]
        %v158 = vld [vmem:[%s118 + $0x90] sm:$0xff]
        %v159 = vld [vmem:[%s118 + $0x98] sm:$0xff]
        %v160 = vld [vmem:[%s118 + $0xa0] sm:$0xff]
        %v161 = vld [vmem:[%s118 + $0xa8] sm:$0xff]
        %v162 = vld [vmem:[%s118 + $0xb0] sm:$0xff]
        %v163 = vld [vmem:[%s118 + $0xb8] sm:$0xff]
        %v164 = vld [vmem:[%s118 + $0xc0] sm:$0xff]
        %v165 = vld [vmem:[%s118 + $0xc8] sm:$0xff]
        %v166 = vld [vmem:[%s118 + $0xd0] sm:$0xff]
        %v167 = vld [vmem:[%s118 + $0xd8] sm:$0xff]
        %v168 = vld [vmem:[%s118 + $0xe0] sm:$0xff]
        %v169 = vld [vmem:[%s118 + $0xe8] sm:$0xff]
        %v170 = vld [vmem:[%s118 + $0xf0] sm:$0xff]
        %v171 = vld [vmem:[%s118 + $0xf8] sm:$0xff]
        %v172 = vld [vmem:[%s118 + $0x100] sm:$0xff]
        %v173 = vld [vmem:[%s118 + $0x108] sm:$0xff]
        %v174 = vld [vmem:[%s118 + $0x110] sm:$0xff]
        %v175 = vld [vmem:[%s118 + $0x118] sm:$0xff]
        %v176 = vld [vmem:[%s118 + $0x120] sm:$0xff]
        %v177 = vld [vmem:[%s118 + $0x128] sm:$0xff]
        %v178 = vld [vmem:[%s118 + $0x130] sm:$0xff]
        %v179 = vld [vmem:[%s118 + $0x138] sm:$0xff]
        %v180 = vld [vmem:[%s118 + $0x140] sm:$0xff]
        %v181 = vld [vmem:[%s118 + $0x148] sm:$0xff]
        %v182 = vld [vmem:[%s118 + $0x150] sm:$0xff]
        %v183 = vld [vmem:[%s118 + $0x158] sm:$0xff]
        %v184 = vld [vmem:[%s118 + $0x160] sm:$0xff]
        %v185 = vld [vmem:[%s118 + $0x168] sm:$0xff]
        %v186 = vld [vmem:[%s118 + $0x170] sm:$0xff]
        %v187 = vld [vmem:[%s118 + $0x178] sm:$0xff]
        %v188 = vld [vmem:[%s118 + $0x180] sm:$0xff]
        %v189 = vld [vmem:[%s118 + $0x188] sm:$0xff]
        %v190 = vld [vmem:[%s118 + $0x190] sm:$0xff]
        %v191 = vld [vmem:[%s118 + $0x198] sm:$0xff]
        %v192 = vld [vmem:[%s118 + $0x1a0] sm:$0xff]
        %v193 = vld [vmem:[%s118 + $0x1a8] sm:$0xff]
        %v194 = vld [vmem:[%s118 + $0x1b0] sm:$0xff]
        %v195 = vld [vmem:[%s118 + $0x1b8] sm:$0xff]
        %v196 = vld [vmem:[%s118 + $0x1c0] sm:$0xff]
        %v197 = vld [vmem:[%s118 + $0x1c8] sm:$0xff]
        %v198 = vld [vmem:[%s118 + $0x1d0] sm:$0xff]
        %v199 = vld [vmem:[%s118 + $0x1d8] sm:$0xff]
        %v200 = vld [vmem:[%s118 + $0x1e0] sm:$0xff]
        %v201 = vld [vmem:[%s118 + $0x1e8] sm:$0xff]
        %v202 = vld [vmem:[%s118 + $0x1f0] sm:$0xff]
        %v203 = vld [vmem:[%s118 + $0x1f8] sm:$0xff]
        %v204 = vld [vmem:[%s118 + $0x200] sm:$0xff]
        %v205 = vld [vmem:[%s118 + $0x208] sm:$0xff]
        %v206 = vld [vmem:[%s118 + $0x210] sm:$0xff]
        %v207 = vld [vmem:[%s118 + $0x218] sm:$0xff]
        %v208 = vld [vmem:[%s118 + $0x220] sm:$0xff]
        %v209 = vld [vmem:[%s118 + $0x228] sm:$0xff]
        %v210 = vld [vmem:[%s118 + $0x230] sm:$0xff]
        %v211 = vld [vmem:[%s118 + $0x238] sm:$0xff]
        %v212 = vld [vmem:[%s118 + $0x240] sm:$0xff]
        %v213 = vld [vmem:[%s118 + $0x248] sm:$0xff]
        %v214 = vld [vmem:[%s118 + $0x250] sm:$0xff]
        %v215 = vld [vmem:[%s118 + $0x258] sm:$0xff]
        %v216 = vld [vmem:[%s118 + $0x260] sm:$0xff]
        %v217 = vld [vmem:[%s118 + $0x268] sm:$0xff]
        %v218 = vld [vmem:[%s118 + $0x270] sm:$0xff]
        %v219 = vld [vmem:[%s118 + $0x278] sm:$0xff]
        %v220 = vld [vmem:[%s118 + $0x280] sm:$0xff]
        %v221 = vld [vmem:[%s118 + $0x288] sm:$0xff]
        %v222 = vld [vmem:[%s118 + $0x290] sm:$0xff]
        %v223 = vld [vmem:[%s118 + $0x298] sm:$0xff]
        %v224 = vld [vmem:[%s118 + $0x2a0] sm:$0xff]
        %v225 = vld [vmem:[%s118 + $0x2a8] sm:$0xff]
        %v226 = vld [vmem:[%s118 + $0x2b0] sm:$0xff]
        %v227 = vld [vmem:[%s118 + $0x2b8] sm:$0xff]
        %v228 = vld [vmem:[%s118 + $0x2c0] sm:$0xff]
        %v229 = vld [vmem:[%s118 + $0x2c8] sm:$0xff]
        %v230 = vld [vmem:[%s118 + $0x2d0] sm:$0xff]
        %v231 = vld [vmem:[%s118 + $0x2d8] sm:$0xff]
        %v232 = vld [vmem:[%s118 + $0x2e0] sm:$0xff]
        %v233 = vld [vmem:[%s118 + $0x2e8] sm:$0xff]
        %v234 = vld [vmem:[%s118 + $0x2f0] sm:$0xff]
        %v235 = vld [vmem:[%s118 + $0x2f8] sm:$0xff]
        %v236 = vld [vmem:[%s118 + $0x300] sm:$0xff]
        %v237 = vld [vmem:[%s118 + $0x308] sm:$0xff]
        %v238 = vld [vmem:[%s118 + $0x310] sm:$0xff]
        %v239 = vld [vmem:[%s118 + $0x318] sm:$0xff]
        %v240 = vld [vmem:[%s118 + $0x320] sm:$0xff]
        %v241 = vld [vmem:[%s118 + $0x328] sm:$0xff]
        %v242 = vld [vmem:[%s118 + $0x330] sm:$0xff]
        %v243 = vld [vmem:[%s118 + $0x338] sm:$0xff]
        %v244 = vld [vmem:[%s118 + $0x340] sm:$0xff]
        %v245 = vld [vmem:[%s118 + $0x348] sm:$0xff]
        %v246 = vld [vmem:[%s118 + $0x350] sm:$0xff]
        %v247 = vld [vmem:[%s118 + $0x358] sm:$0xff]
        %v248 = vld [vmem:[%s118 + $0x360] sm:$0xff]
        %v249 = vld [vmem:[%s118 + $0x368] sm:$0xff]
        %v250 = vld [vmem:[%s118 + $0x370] sm:$0xff]
        %v251 = vld [vmem:[%s118 + $0x378] sm:$0xff]
        %v252 = vld [vmem:[%s118 + $0x380] sm:$0xff]
        %v253 = vld [vmem:[%s118 + $0x388] sm:$0xff]
        %v254 = vld [vmem:[%s118 + $0x390] sm:$0xff]
        %v255 = vld [vmem:[%s118 + $0x398] sm:$0xff]
        %v256 = vld [vmem:[%s118 + $0x3a0] sm:$0xff]
        %v257 = vld [vmem:[%s118 + $0x3a8] sm:$0xff]
        %v258 = vld [vmem:[%s118 + $0x3b0] sm:$0xff]
        %v259 = vld [vmem:[%s118 + $0x3b8] sm:$0xff]
        %v260 = vld [vmem:[%s118 + $0x3c0] sm:$0xff]
        %v261 = vld [vmem:[%s118 + $0x3c8] sm:$0xff]
        %v262 = vld [vmem:[%s118 + $0x3d0] sm:$0xff]
        %v263 = vld [vmem:[%s118 + $0x3d8] sm:$0xff]
        %v264 = vld [vmem:[%s118 + $0x3e0] sm:$0xff]
        %v265 = vld [vmem:[%s118 + $0x3e8] sm:$0xff]
        %v266 = vld [vmem:[%s118 + $0x3f0] sm:$0xff]
        %v267 = vld [vmem:[%s118 + $0x3f8] sm:$0xff]
        %v268 = vld [vmem:[%s118 + $0x400] sm:$0xff]
        %v269 = vld [vmem:[%s118 + $0x408] sm:$0xff]
        %v270 = vld [vmem:[%s118 + $0x410] sm:$0xff]
        %v271 = vld [vmem:[%s118 + $0x418] sm:$0xff]
        %v272 = vld [vmem:[%s118 + $0x420] sm:$0xff]
        %v273 = vld [vmem:[%s118 + $0x428] sm:$0xff]
        %v274 = vld [vmem:[%s118 + $0x430] sm:$0xff]
        %v275 = vld [vmem:[%s118 + $0x438] sm:$0xff]
        %v276 = vld [vmem:[%s118 + $0x440] sm:$0xff]
        %v277 = vld [vmem:[%s118 + $0x448] sm:$0xff]
        %v278 = vld [vmem:[%s118 + $0x450] sm:$0xff]
        %v279 = vld [vmem:[%s118 + $0x458] sm:$0xff]
        %v280 = vld [vmem:[%s118 + $0x460] sm:$0xff]
        %v281 = vld [vmem:[%s118 + $0x468] sm:$0xff]
        %v282 = vld [vmem:[%s118 + $0x470] sm:$0xff]
        %v283 = vld [vmem:[%s118 + $0x478] sm:$0xff]
        %v284 = vld [vmem:[%s118 + $0x480] sm:$0xff]
        %v285 = vld [vmem:[%s118 + $0x488] sm:$0xff]
        %v286 = vld [vmem:[%s118 + $0x490] sm:$0xff]
        %v287 = vld [vmem:[%s118 + $0x498] sm:$0xff]
        %v288 = vld [vmem:[%s118 + $0x4a0] sm:$0xff]
        %v289 = vld [vmem:[%s118 + $0x4a8] sm:$0xff]
        %v290 = vld [vmem:[%s118 + $0x4b0] sm:$0xff]
        %v291 = vld [vmem:[%s118 + $0x4b8] sm:$0xff]
        %v292 = vld [vmem:[%s118 + $0x4c0] sm:$0xff]
        %v293 = vld [vmem:[%s118 + $0x4c8] sm:$0xff]
        %v294 = vld [vmem:[%s118 + $0x4d0] sm:$0xff]
        %v295 = vld [vmem:[%s118 + $0x4d8] sm:$0xff]
        %v296 = vld [vmem:[%s118 + $0x4e0] sm:$0xff]
        %v297 = vld [vmem:[%s118 + $0x4e8] sm:$0xff]
        %v298 = vld [vmem:[%s118 + $0x4f0] sm:$0xff]
        %v299 = vld [vmem:[%s118 + $0x4f8] sm:$0xff]
        %v300 = vld [vmem:[%s118 + $0x500] sm:$0xff]
        %v301 = vld [vmem:[%s118 + $0x508] sm:$0xff]
        %v302 = vld [vmem:[%s118 + $0x510] sm:$0xff]
        %v303 = vld [vmem:[%s118 + $0x518] sm:$0xff]
        %v304 = vld [vmem:[%s118 + $0x520] sm:$0xff]
        %v305 = vld [vmem:[%s118 + $0x528] sm:$0xff]
        %v306 = vld [vmem:[%s118 + $0x530] sm:$0xff]
        %v307 = vld [vmem:[%s118 + $0x538] sm:$0xff]
        %v308 = vld [vmem:[%s118 + $0x540] sm:$0xff]
        %v309 = vld [vmem:[%s118 + $0x548] sm:$0xff]
        %v310 = vld [vmem:[%s118 + $0x550] sm:$0xff]
        %v311 = vld [vmem:[%s118 + $0x558] sm:$0xff]
        %v312 = vld [vmem:[%s118 + $0x560] sm:$0xff]
        %v313 = vld [vmem:[%s118 + $0x568] sm:$0xff]
        %v314 = vld [vmem:[%s118 + $0x570] sm:$0xff]
        %v315 = vld [vmem:[%s118 + $0x578] sm:$0xff]
        %v316 = vld [vmem:[%s118 + $0x580] sm:$0xff]
        %v317 = vld [vmem:[%s118 + $0x588] sm:$0xff]
        %v318 = vld [vmem:[%s118 + $0x590] sm:$0xff]
        %v319 = vld [vmem:[%s118 + $0x598] sm:$0xff]
        %v320 = vld [vmem:[%s118 + $0x5a0] sm:$0xff]
        %v321 = vld [vmem:[%s118 + $0x5a8] sm:$0xff]
        %v322 = vld [vmem:[%s118 + $0x5b0] sm:$0xff]
        %v323 = vld [vmem:[%s118 + $0x5b8] sm:$0xff]
        %v324 = vld [vmem:[%s118 + $0x5c0] sm:$0xff]
        %v325 = vld [vmem:[%s118 + $0x5c8] sm:$0xff]
        %v326 = vld [vmem:[%s118 + $0x5d0] sm:$0xff]
        %v327 = vld [vmem:[%s118 + $0x5d8] sm:$0xff]
        %v328 = vld [vmem:[%s118 + $0x5e0] sm:$0xff]
        %v329 = vld [vmem:[%s118 + $0x5e8] sm:$0xff]
        %v330 = vld [vmem:[%s118 + $0x5f0] sm:$0xff]
        %v331 = vld [vmem:[%s118 + $0x5f8] sm:$0xff]
        %v332 = vld [vmem:[%s118 + $0x600] sm:$0xff]
        %v333 = vld [vmem:[%s118 + $0x608] sm:$0xff]
        %v334 = vld [vmem:[%s118 + $0x610] sm:$0xff]
        %v335 = vld [vmem:[%s118 + $0x618] sm:$0xff]
        %v336 = vld [vmem:[%s118 + $0x620] sm:$0xff]
        %v337 = vld [vmem:[%s118 + $0x628] sm:$0xff]
        %v338 = vld [vmem:[%s118 + $0x630] sm:$0xff]
        %v339 = vld [vmem:[%s118 + $0x638] sm:$0xff]
        %v340 = vld [vmem:[%s118 + $0x640] sm:$0xff]
        %v341 = vld [vmem:[%s118 + $0x648] sm:$0xff]
        %v342 = vld [vmem:[%s118 + $0x650] sm:$0xff]
        %v343 = vld [vmem:[%s118 + $0x658] sm:$0xff]
        %v344 = vld [vmem:[%s118 + $0x660] sm:$0xff]
        %v345 = vld [vmem:[%s118 + $0x668] sm:$0xff]
        %v346 = vld [vmem:[%s118 + $0x670] sm:$0xff]
        %v347 = vld [vmem:[%s118 + $0x678] sm:$0xff]
        %v348 = vld [vmem:[%s118 + $0x680] sm:$0xff]
        %v349 = vld [vmem:[%s118 + $0x688] sm:$0xff]
        %v350 = vld [vmem:[%s118 + $0x690] sm:$0xff]
        %v351 = vld [vmem:[%s118 + $0x698] sm:$0xff]
        %v352 = vld [vmem:[%s118 + $0x6a0] sm:$0xff]
        %v353 = vld [vmem:[%s118 + $0x6a8] sm:$0xff]
        %v354 = vld [vmem:[%s118 + $0x6b0] sm:$0xff]
        %v355 = vld [vmem:[%s118 + $0x6b8] sm:$0xff]
        %v356 = vld [vmem:[%s118 + $0x6c0] sm:$0xff]
        %v357 = vld [vmem:[%s118 + $0x6c8] sm:$0xff]
        %v358 = vld [vmem:[%s118 + $0x6d0] sm:$0xff]
        %v359 = vld [vmem:[%s118 + $0x6d8] sm:$0xff]
        %v360 = vld [vmem:[%s118 + $0x6e0] sm:$0xff]
        %v361 = vld [vmem:[%s118 + $0x6e8] sm:$0xff]
        %v362 = vld [vmem:[%s118 + $0x6f0] sm:$0xff]
        %v363 = vld [vmem:[%s118 + $0x6f8] sm:$0xff]
        %v364 = vld [vmem:[%s118 + $0x700] sm:$0xff]
        %v365 = vld [vmem:[%s118 + $0x708] sm:$0xff]
        %v366 = vld [vmem:[%s118 + $0x710] sm:$0xff]
        %v367 = vld [vmem:[%s118 + $0x718] sm:$0xff]
        %v368 = vld [vmem:[%s118 + $0x720] sm:$0xff]
        %v369 = vld [vmem:[%s118 + $0x728] sm:$0xff]
        %v370 = vld [vmem:[%s118 + $0x730] sm:$0xff]
        %v371 = vld [vmem:[%s118 + $0x738] sm:$0xff]
        %v372 = vld [vmem:[%s118 + $0x740] sm:$0xff]
        %v373 = vld [vmem:[%s118 + $0x748] sm:$0xff]
        %v374 = vld [vmem:[%s118 + $0x750] sm:$0xff]
        %v375 = vld [vmem:[%s118 + $0x758] sm:$0xff]
        %v376 = vld [vmem:[%s118 + $0x760] sm:$0xff]
        %v377 = vld [vmem:[%s118 + $0x768] sm:$0xff]
        %v378 = vld [vmem:[%s118 + $0x770] sm:$0xff]
        %v379 = vld [vmem:[%s118 + $0x778] sm:$0xff]
        %v380 = vld [vmem:[%s118 + $0x780] sm:$0xff]
        %v381 = vld [vmem:[%s118 + $0x788] sm:$0xff]
        %v382 = vld [vmem:[%s118 + $0x790] sm:$0xff]
        %v383 = vld [vmem:[%s118 + $0x798] sm:$0xff]
        %v384 = vld [vmem:[%s118 + $0x7a0] sm:$0xff]
        %v385 = vld [vmem:[%s118 + $0x7a8] sm:$0xff]
        %v386 = vld [vmem:[%s118 + $0x7b0] sm:$0xff]
        %v387 = vld [vmem:[%s118 + $0x7b8] sm:$0xff]
        %v388 = vld [vmem:[%s118 + $0x7c0] sm:$0xff]
        %v389 = vld [vmem:[%s118 + $0x7c8] sm:$0xff]
        %v390 = vld [vmem:[%s118 + $0x7d0] sm:$0xff]
        %v391 = vld [vmem:[%s118 + $0x7d8] sm:$0xff]
        %v392 = vld [vmem:[%s118 + $0x7e0] sm:$0xff]
        %v393 = vld [vmem:[%s118 + $0x7e8] sm:$0xff]
        %v394 = vld [vmem:[%s118 + $0x7f0] sm:$0xff]
        %v395 = vld [vmem:[%s118 + $0x7f8] sm:$0xff]
        %v396 = vmul.f32 %v140, %v140
        %v397 = vmul.f32 %v141, %v141
        %v398 = vmul.f32 %v142, %v142
        %v399 = vmul.f32 %v143, %v143
        %v400 = vmul.f32 %v144, %v144
        %v401 = vmul.f32 %v145, %v145
        %v402 = vmul.f32 %v146, %v146
        %v403 = vmul.f32 %v147, %v147
        %v404 = vmul.f32 %v148, %v148
        %v405 = vmul.f32 %v149, %v149
        %v406 = vmul.f32 %v150, %v150
        %v407 = vmul.f32 %v151, %v151
        %v408 = vmul.f32 %v152, %v152
        %v409 = vmul.f32 %v153, %v153
        %v410 = vmul.f32 %v154, %v154
        %v411 = vmul.f32 %v155, %v155
        %v412 = vmul.f32 %v156, %v156
        %v413 = vmul.f32 %v157, %v157
        %v414 = vmul.f32 %v158, %v158
        %v415 = vmul.f32 %v159, %v159
        %v416 = vmul.f32 %v160, %v160
        %v417 = vmul.f32 %v161, %v161
        %v418 = vmul.f32 %v162, %v162
        %v419 = vmul.f32 %v163, %v163
        %v420 = vmul.f32 %v164, %v164
        %v421 = vmul.f32 %v165, %v165
        %v422 = vmul.f32 %v166, %v166
        %v423 = vmul.f32 %v167, %v167
        %v424 = vmul.f32 %v168, %v168
        %v425 = vmul.f32 %v169, %v169
        %v426 = vmul.f32 %v170, %v170
        %v427 = vmul.f32 %v171, %v171
        %v428 = vmul.f32 %v172, %v172
        %v429 = vmul.f32 %v173, %v173
        %v430 = vmul.f32 %v174, %v174
        %v431 = vmul.f32 %v175, %v175
        %v432 = vmul.f32 %v176, %v176
        %v433 = vmul.f32 %v177, %v177
        %v434 = vmul.f32 %v178, %v178
        %v435 = vmul.f32 %v179, %v179
        %v436 = vmul.f32 %v180, %v180
        %v437 = vmul.f32 %v181, %v181
        %v438 = vmul.f32 %v182, %v182
        %v439 = vmul.f32 %v183, %v183
        %v440 = vmul.f32 %v184, %v184
        %v441 = vmul.f32 %v185, %v185
        %v442 = vmul.f32 %v186, %v186
        %v443 = vmul.f32 %v187, %v187
        %v444 = vmul.f32 %v188, %v188
        %v445 = vmul.f32 %v189, %v189
        %v446 = vmul.f32 %v190, %v190
        %v447 = vmul.f32 %v191, %v191
        %v448 = vmul.f32 %v192, %v192
        %v449 = vmul.f32 %v193, %v193
        %v450 = vmul.f32 %v194, %v194
        %v451 = vmul.f32 %v195, %v195
        %v452 = vmul.f32 %v196, %v196
        %v453 = vmul.f32 %v197, %v197
        %v454 = vmul.f32 %v198, %v198
        %v455 = vmul.f32 %v199, %v199
        %v456 = vmul.f32 %v200, %v200
        %v457 = vmul.f32 %v201, %v201
        %v458 = vmul.f32 %v202, %v202
        %v459 = vmul.f32 %v203, %v203
        %v460 = vmul.f32 %v204, %v204
        %v461 = vmul.f32 %v205, %v205
        %v462 = vmul.f32 %v206, %v206
        %v463 = vmul.f32 %v207, %v207
        %v464 = vmul.f32 %v208, %v208
        %v465 = vmul.f32 %v209, %v209
        %v466 = vmul.f32 %v210, %v210
        %v467 = vmul.f32 %v211, %v211
        %v468 = vmul.f32 %v212, %v212
        %v469 = vmul.f32 %v213, %v213
        %v470 = vmul.f32 %v214, %v214
        %v471 = vmul.f32 %v215, %v215
        %v472 = vmul.f32 %v216, %v216
        %v473 = vmul.f32 %v217, %v217
        %v474 = vmul.f32 %v218, %v218
        %v475 = vmul.f32 %v219, %v219
        %v476 = vmul.f32 %v220, %v220
        %v477 = vmul.f32 %v221, %v221
        %v478 = vmul.f32 %v222, %v222
        %v479 = vmul.f32 %v223, %v223
        %v480 = vmul.f32 %v224, %v224
        %v481 = vmul.f32 %v225, %v225
        %v482 = vmul.f32 %v226, %v226
        %v483 = vmul.f32 %v227, %v227
        %v484 = vmul.f32 %v228, %v228
        %v485 = vmul.f32 %v229, %v229
        %v486 = vmul.f32 %v230, %v230
        %v487 = vmul.f32 %v231, %v231
        %v488 = vmul.f32 %v232, %v232
        %v489 = vmul.f32 %v233, %v233
        %v490 = vmul.f32 %v234, %v234
        %v491 = vmul.f32 %v235, %v235
        %v492 = vmul.f32 %v236, %v236
        %v493 = vmul.f32 %v237, %v237
        %v494 = vmul.f32 %v238, %v238
        %v495 = vmul.f32 %v239, %v239
        %v496 = vmul.f32 %v240, %v240
        %v497 = vmul.f32 %v241, %v241
        %v498 = vmul.f32 %v242, %v242
        %v499 = vmul.f32 %v243, %v243
        %v500 = vmul.f32 %v244, %v244
        %v501 = vmul.f32 %v245, %v245
        %v502 = vmul.f32 %v246, %v246
        %v503 = vmul.f32 %v247, %v247
        %v504 = vmul.f32 %v248, %v248
        %v505 = vmul.f32 %v249, %v249
        %v506 = vmul.f32 %v250, %v250
        %v507 = vmul.f32 %v251, %v251
        %v508 = vmul.f32 %v252, %v252
        %v509 = vmul.f32 %v253, %v253
        %v510 = vmul.f32 %v254, %v254
        %v511 = vmul.f32 %v255, %v255
        %v512 = vmul.f32 %v256, %v256
        %v513 = vmul.f32 %v257, %v257
        %v514 = vmul.f32 %v258, %v258
        %v515 = vmul.f32 %v259, %v259
        %v516 = vmul.f32 %v260, %v260
        %v517 = vmul.f32 %v261, %v261
        %v518 = vmul.f32 %v262, %v262
        %v519 = vmul.f32 %v263, %v263
        %v520 = vmul.f32 %v264, %v264
        %v521 = vmul.f32 %v265, %v265
        %v522 = vmul.f32 %v266, %v266
        %v523 = vmul.f32 %v267, %v267
        %v524 = vmul.f32 %v268, %v268
        %v525 = vmul.f32 %v269, %v269
        %v526 = vmul.f32 %v270, %v270
        %v527 = vmul.f32 %v271, %v271
        %v528 = vmul.f32 %v272, %v272
        %v529 = vmul.f32 %v273, %v273
        %v530 = vmul.f32 %v274, %v274
        %v531 = vmul.f32 %v275, %v275
        %v532 = vmul.f32 %v276, %v276
        %v533 = vmul.f32 %v277, %v277
        %v534 = vmul.f32 %v278, %v278
        %v535 = vmul.f32 %v279, %v279
        %v536 = vmul.f32 %v280, %v280
        %v537 = vmul.f32 %v281, %v281
        %v538 = vmul.f32 %v282, %v282
        %v539 = vmul.f32 %v283, %v283
        %v540 = vmul.f32 %v284, %v284
        %v541 = vmul.f32 %v285, %v285
        %v542 = vmul.f32 %v286, %v286
        %v543 = vmul.f32 %v287, %v287
        %v544 = vmul.f32 %v288, %v288
        %v545 = vmul.f32 %v289, %v289
        %v546 = vmul.f32 %v290, %v290
        %v547 = vmul.f32 %v291, %v291
        %v548 = vmul.f32 %v292, %v292
        %v549 = vmul.f32 %v293, %v293
        %v550 = vmul.f32 %v294, %v294
        %v551 = vmul.f32 %v295, %v295
        %v552 = vmul.f32 %v296, %v296
        %v553 = vmul.f32 %v297, %v297
        %v554 = vmul.f32 %v298, %v298
        %v555 = vmul.f32 %v299, %v299
        %v556 = vmul.f32 %v300, %v300
        %v557 = vmul.f32 %v301, %v301
        %v558 = vmul.f32 %v302, %v302
        %v559 = vmul.f32 %v303, %v303
        %v560 = vmul.f32 %v304, %v304
        %v561 = vmul.f32 %v305, %v305
        %v562 = vmul.f32 %v306, %v306
        %v563 = vmul.f32 %v307, %v307
        %v564 = vmul.f32 %v308, %v308
        %v565 = vmul.f32 %v309, %v309
        %v566 = vmul.f32 %v310, %v310
        %v567 = vmul.f32 %v311, %v311
        %v568 = vmul.f32 %v312, %v312
        %v569 = vmul.f32 %v313, %v313
        %v570 = vmul.f32 %v314, %v314
        %v571 = vmul.f32 %v315, %v315
        %v572 = vmul.f32 %v316, %v316
        %v573 = vmul.f32 %v317, %v317
        %v574 = vmul.f32 %v318, %v318
        %v575 = vmul.f32 %v319, %v319
        %v576 = vmul.f32 %v320, %v320
        %v577 = vmul.f32 %v321, %v321
        %v578 = vmul.f32 %v322, %v322
        %v579 = vmul.f32 %v323, %v323
        %v580 = vmul.f32 %v324, %v324
        %v581 = vmul.f32 %v325, %v325
        %v582 = vmul.f32 %v326, %v326
        %v583 = vmul.f32 %v327, %v327
        %v584 = vmul.f32 %v328, %v328
        %v585 = vmul.f32 %v329, %v329
        %v586 = vmul.f32 %v330, %v330
        %v587 = vmul.f32 %v331, %v331
        %v588 = vmul.f32 %v332, %v332
        %v589 = vmul.f32 %v333, %v333
        %v590 = vmul.f32 %v334, %v334
        %v591 = vmul.f32 %v335, %v335
        %v592 = vmul.f32 %v336, %v336
        %v593 = vmul.f32 %v337, %v337
        %v594 = vmul.f32 %v338, %v338
        %v595 = vmul.f32 %v339, %v339
        %v596 = vmul.f32 %v340, %v340
        %v597 = vmul.f32 %v341, %v341
        %v598 = vmul.f32 %v342, %v342
        %v599 = vmul.f32 %v343, %v343
        %v600 = vmul.f32 %v344, %v344
        %v601 = vmul.f32 %v345, %v345
        %v602 = vmul.f32 %v346, %v346
        %v603 = vmul.f32 %v347, %v347
        %v604 = vmul.f32 %v348, %v348
        %v605 = vmul.f32 %v349, %v349
        %v606 = vmul.f32 %v350, %v350
        %v607 = vmul.f32 %v351, %v351
        %v608 = vmul.f32 %v352, %v352
        %v609 = vmul.f32 %v353, %v353
        %v610 = vmul.f32 %v354, %v354
        %v611 = vmul.f32 %v355, %v355
        %v612 = vmul.f32 %v356, %v356
        %v613 = vmul.f32 %v357, %v357
        %v614 = vmul.f32 %v358, %v358
        %v615 = vmul.f32 %v359, %v359
        %v616 = vmul.f32 %v360, %v360
        %v617 = vmul.f32 %v361, %v361
        %v618 = vmul.f32 %v362, %v362
        %v619 = vmul.f32 %v363, %v363
        %v620 = vmul.f32 %v364, %v364
        %v621 = vmul.f32 %v365, %v365
        %v622 = vmul.f32 %v366, %v366
        %v623 = vmul.f32 %v367, %v367
        %v624 = vmul.f32 %v368, %v368
        %v625 = vmul.f32 %v369, %v369
        %v626 = vmul.f32 %v370, %v370
        %v627 = vmul.f32 %v371, %v371
        %v628 = vmul.f32 %v372, %v372
        %v629 = vmul.f32 %v373, %v373
        %v630 = vmul.f32 %v374, %v374
        %v631 = vmul.f32 %v375, %v375
        %v632 = vmul.f32 %v376, %v376
        %v633 = vmul.f32 %v377, %v377
        %v634 = vmul.f32 %v378, %v378
        %v635 = vmul.f32 %v379, %v379
        %v636 = vmul.f32 %v380, %v380
        %v637 = vmul.f32 %v381, %v381
        %v638 = vmul.f32 %v382, %v382
        %v639 = vmul.f32 %v383, %v383
        %v640 = vmul.f32 %v384, %v384
        %v641 = vmul.f32 %v385, %v385
        %v642 = vmul.f32 %v386, %v386
        %v643 = vmul.f32 %v387, %v387
        %v644 = vmul.f32 %v388, %v388
        %v645 = vmul.f32 %v389, %v389
        %v646 = vmul.f32 %v390, %v390
        %v647 = vmul.f32 %v391, %v391
        %v648 = vmul.f32 %v392, %v392
        %v649 = vmul.f32 %v393, %v393
        %v650 = vmul.f32 %v394, %v394
        %v651 = vmul.f32 %v395, %v395
        %v652 = vmul.f32 %v396, 0.035677407
        %v653 = vmul.f32 %v397, 0.035677407
        %v654 = vmul.f32 %v398, 0.035677407
        %v655 = vmul.f32 %v399, 0.035677407
        %v656 = vmul.f32 %v400, 0.035677407
        %v657 = vmul.f32 %v401, 0.035677407
        %v658 = vmul.f32 %v402, 0.035677407
        %v659 = vmul.f32 %v403, 0.035677407
        %v660 = vmul.f32 %v404, 0.035677407
        %v661 = vmul.f32 %v405, 0.035677407
        %v662 = vmul.f32 %v406, 0.035677407
        %v663 = vmul.f32 %v407, 0.035677407
        %v664 = vmul.f32 %v408, 0.035677407
        %v665 = vmul.f32 %v409, 0.035677407
        %v666 = vmul.f32 %v410, 0.035677407
        %v667 = vmul.f32 %v411, 0.035677407
        %v668 = vmul.f32 %v412, 0.035677407
        %v669 = vmul.f32 %v413, 0.035677407
        %v670 = vmul.f32 %v414, 0.035677407
        %v671 = vmul.f32 %v415, 0.035677407
        %v672 = vmul.f32 %v416, 0.035677407
        %v673 = vmul.f32 %v417, 0.035677407
        %v674 = vmul.f32 %v418, 0.035677407
        %v675 = vmul.f32 %v419, 0.035677407
        %v676 = vmul.f32 %v420, 0.035677407
        %v677 = vmul.f32 %v421, 0.035677407
        %v678 = vmul.f32 %v422, 0.035677407
        %v679 = vmul.f32 %v423, 0.035677407
        %v680 = vmul.f32 %v424, 0.035677407
        %v681 = vmul.f32 %v425, 0.035677407
        %v682 = vmul.f32 %v426, 0.035677407
        %v683 = vmul.f32 %v427, 0.035677407
        %v684 = vmul.f32 %v428, 0.035677407
        %v685 = vmul.f32 %v429, 0.035677407
        %v686 = vmul.f32 %v430, 0.035677407
        %v687 = vmul.f32 %v431, 0.035677407
        %v688 = vmul.f32 %v432, 0.035677407
        %v689 = vmul.f32 %v433, 0.035677407
        %v690 = vmul.f32 %v434, 0.035677407
        %v691 = vmul.f32 %v435, 0.035677407
        %v692 = vmul.f32 %v436, 0.035677407
        %v693 = vmul.f32 %v437, 0.035677407
        %v694 = vmul.f32 %v438, 0.035677407
        %v695 = vmul.f32 %v439, 0.035677407
        %v696 = vmul.f32 %v440, 0.035677407
        %v697 = vmul.f32 %v441, 0.035677407
        %v698 = vmul.f32 %v442, 0.035677407
        %v699 = vmul.f32 %v443, 0.035677407
        %v700 = vmul.f32 %v444, 0.035677407
        %v701 = vmul.f32 %v445, 0.035677407
        %v702 = vmul.f32 %v446, 0.035677407
        %v703 = vmul.f32 %v447, 0.035677407
        %v704 = vmul.f32 %v448, 0.035677407
        %v705 = vmul.f32 %v449, 0.035677407
        %v706 = vmul.f32 %v450, 0.035677407
        %v707 = vmul.f32 %v451, 0.035677407
        %v708 = vmul.f32 %v452, 0.035677407
        %v709 = vmul.f32 %v453, 0.035677407
        %v710 = vmul.f32 %v454, 0.035677407
        %v711 = vmul.f32 %v455, 0.035677407
        %v712 = vmul.f32 %v456, 0.035677407
        %v713 = vmul.f32 %v457, 0.035677407
        %v714 = vmul.f32 %v458, 0.035677407
        %v715 = vmul.f32 %v459, 0.035677407
        %v716 = vmul.f32 %v460, 0.035677407
        %v717 = vmul.f32 %v461, 0.035677407
        %v718 = vmul.f32 %v462, 0.035677407
        %v719 = vmul.f32 %v463, 0.035677407
        %v720 = vmul.f32 %v464, 0.035677407
        %v721 = vmul.f32 %v465, 0.035677407
        %v722 = vmul.f32 %v466, 0.035677407
        %v723 = vmul.f32 %v467, 0.035677407
        %v724 = vmul.f32 %v468, 0.035677407
        %v725 = vmul.f32 %v469, 0.035677407
        %v726 = vmul.f32 %v470, 0.035677407
        %v727 = vmul.f32 %v471, 0.035677407
        %v728 = vmul.f32 %v472, 0.035677407
        %v729 = vmul.f32 %v473, 0.035677407
        %v730 = vmul.f32 %v474, 0.035677407
        %v731 = vmul.f32 %v475, 0.035677407
        %v732 = vmul.f32 %v476, 0.035677407
        %v733 = vmul.f32 %v477, 0.035677407
        %v734 = vmul.f32 %v478, 0.035677407
        %v735 = vmul.f32 %v479, 0.035677407
        %v736 = vmul.f32 %v480, 0.035677407
        %v737 = vmul.f32 %v481, 0.035677407
        %v738 = vmul.f32 %v482, 0.035677407
        %v739 = vmul.f32 %v483, 0.035677407
        %v740 = vmul.f32 %v484, 0.035677407
        %v741 = vmul.f32 %v485, 0.035677407
        %v742 = vmul.f32 %v486, 0.035677407
        %v743 = vmul.f32 %v487, 0.035677407
        %v744 = vmul.f32 %v488, 0.035677407
        %v745 = vmul.f32 %v489, 0.035677407
        %v746 = vmul.f32 %v490, 0.035677407
        %v747 = vmul.f32 %v491, 0.035677407
        %v748 = vmul.f32 %v492, 0.035677407
        %v749 = vmul.f32 %v493, 0.035677407
        %v750 = vmul.f32 %v494, 0.035677407
        %v751 = vmul.f32 %v495, 0.035677407
        %v752 = vmul.f32 %v496, 0.035677407
        %v753 = vmul.f32 %v497, 0.035677407
        %v754 = vmul.f32 %v498, 0.035677407
        %v755 = vmul.f32 %v499, 0.035677407
        %v756 = vmul.f32 %v500, 0.035677407
        %v757 = vmul.f32 %v501, 0.035677407
        %v758 = vmul.f32 %v502, 0.035677407
        %v759 = vmul.f32 %v503, 0.035677407
        %v760 = vmul.f32 %v504, 0.035677407
        %v761 = vmul.f32 %v505, 0.035677407
        %v762 = vmul.f32 %v506, 0.035677407
        %v763 = vmul.f32 %v507, 0.035677407
        %v764 = vmul.f32 %v508, 0.035677407
        %v765 = vmul.f32 %v509, 0.035677407
        %v766 = vmul.f32 %v510, 0.035677407
        %v767 = vmul.f32 %v511, 0.035677407
        %v768 = vmul.f32 %v512, 0.035677407
        %v769 = vmul.f32 %v513, 0.035677407
        %v770 = vmul.f32 %v514, 0.035677407
        %v771 = vmul.f32 %v515, 0.035677407
        %v772 = vmul.f32 %v516, 0.035677407
        %v773 = vmul.f32 %v517, 0.035677407
        %v774 = vmul.f32 %v518, 0.035677407
        %v775 = vmul.f32 %v519, 0.035677407
        %v776 = vmul.f32 %v520, 0.035677407
        %v777 = vmul.f32 %v521, 0.035677407
        %v778 = vmul.f32 %v522, 0.035677407
        %v779 = vmul.f32 %v523, 0.035677407
        %v780 = vmul.f32 %v524, 0.035677407
        %v781 = vmul.f32 %v525, 0.035677407
        %v782 = vmul.f32 %v526, 0.035677407
        %v783 = vmul.f32 %v527, 0.035677407
        %v784 = vmul.f32 %v528, 0.035677407
        %v785 = vmul.f32 %v529, 0.035677407
        %v786 = vmul.f32 %v530, 0.035677407
        %v787 = vmul.f32 %v531, 0.035677407
        %v788 = vmul.f32 %v532, 0.035677407
        %v789 = vmul.f32 %v533, 0.035677407
        %v790 = vmul.f32 %v534, 0.035677407
        %v791 = vmul.f32 %v535, 0.035677407
        %v792 = vmul.f32 %v536, 0.035677407
        %v793 = vmul.f32 %v537, 0.035677407
        %v794 = vmul.f32 %v538, 0.035677407
        %v795 = vmul.f32 %v539, 0.035677407
        %v796 = vmul.f32 %v540, 0.035677407
        %v797 = vmul.f32 %v541, 0.035677407
        %v798 = vmul.f32 %v542, 0.035677407
        %v799 = vmul.f32 %v543, 0.035677407
        %v800 = vmul.f32 %v544, 0.035677407
        %v801 = vmul.f32 %v545, 0.035677407
        %v802 = vmul.f32 %v546, 0.035677407
        %v803 = vmul.f32 %v547, 0.035677407
        %v804 = vmul.f32 %v548, 0.035677407
        %v805 = vmul.f32 %v549, 0.035677407
        %v806 = vmul.f32 %v550, 0.035677407
        %v807 = vmul.f32 %v551, 0.035677407
        %v808 = vmul.f32 %v552, 0.035677407
        %v809 = vmul.f32 %v553, 0.035677407
        %v810 = vmul.f32 %v554, 0.035677407
        %v811 = vmul.f32 %v555, 0.035677407
        %v812 = vmul.f32 %v556, 0.035677407
        %v813 = vmul.f32 %v557, 0.035677407
        %v814 = vmul.f32 %v558, 0.035677407
        %v815 = vmul.f32 %v559, 0.035677407
        %v816 = vmul.f32 %v560, 0.035677407
        %v817 = vmul.f32 %v561, 0.035677407
        %v818 = vmul.f32 %v562, 0.035677407
        %v819 = vmul.f32 %v563, 0.035677407
        %v820 = vmul.f32 %v564, 0.035677407
        %v821 = vmul.f32 %v565, 0.035677407
        %v822 = vmul.f32 %v566, 0.035677407
        %v823 = vmul.f32 %v567, 0.035677407
        %v824 = vmul.f32 %v568, 0.035677407
        %v825 = vmul.f32 %v569, 0.035677407
        %v826 = vmul.f32 %v570, 0.035677407
        %v827 = vmul.f32 %v571, 0.035677407
        %v828 = vmul.f32 %v572, 0.035677407
        %v829 = vmul.f32 %v573, 0.035677407
        %v830 = vmul.f32 %v574, 0.035677407
        %v831 = vmul.f32 %v575, 0.035677407
        %v832 = vmul.f32 %v576, 0.035677407
        %v833 = vmul.f32 %v577, 0.035677407
        %v834 = vmul.f32 %v578, 0.035677407
        %v835 = vmul.f32 %v579, 0.035677407
        %v836 = vmul.f32 %v580, 0.035677407
        %v837 = vmul.f32 %v581, 0.035677407
        %v838 = vmul.f32 %v582, 0.035677407
        %v839 = vmul.f32 %v583, 0.035677407
        %v840 = vmul.f32 %v584, 0.035677407
        %v841 = vmul.f32 %v585, 0.035677407
        %v842 = vmul.f32 %v586, 0.035677407
        %v843 = vmul.f32 %v587, 0.035677407
        %v844 = vmul.f32 %v588, 0.035677407
        %v845 = vmul.f32 %v589, 0.035677407
        %v846 = vmul.f32 %v590, 0.035677407
        %v847 = vmul.f32 %v591, 0.035677407
        %v848 = vmul.f32 %v592, 0.035677407
        %v849 = vmul.f32 %v593, 0.035677407
        %v850 = vmul.f32 %v594, 0.035677407
        %v851 = vmul.f32 %v595, 0.035677407
        %v852 = vmul.f32 %v596, 0.035677407
        %v853 = vmul.f32 %v597, 0.035677407
        %v854 = vmul.f32 %v598, 0.035677407
        %v855 = vmul.f32 %v599, 0.035677407
        %v856 = vmul.f32 %v600, 0.035677407
        %v857 = vmul.f32 %v601, 0.035677407
        %v858 = vmul.f32 %v602, 0.035677407
        %v859 = vmul.f32 %v603, 0.035677407
        %v860 = vmul.f32 %v604, 0.035677407
        %v861 = vmul.f32 %v605, 0.035677407
        %v862 = vmul.f32 %v606, 0.035677407
        %v863 = vmul.f32 %v607, 0.035677407
        %v864 = vmul.f32 %v608, 0.035677407
        %v865 = vmul.f32 %v609, 0.035677407
        %v866 = vmul.f32 %v610, 0.035677407
        %v867 = vmul.f32 %v611, 0.035677407
        %v868 = vmul.f32 %v612, 0.035677407
        %v869 = vmul.f32 %v613, 0.035677407
        %v870 = vmul.f32 %v614, 0.035677407
        %v871 = vmul.f32 %v615, 0.035677407
        %v872 = vmul.f32 %v616, 0.035677407
        %v873 = vmul.f32 %v617, 0.035677407
        %v874 = vmul.f32 %v618, 0.035677407
        %v875 = vmul.f32 %v619, 0.035677407
        %v876 = vmul.f32 %v620, 0.035677407
        %v877 = vmul.f32 %v621, 0.035677407
        %v878 = vmul.f32 %v622, 0.035677407
        %v879 = vmul.f32 %v623, 0.035677407
        %v880 = vmul.f32 %v624, 0.035677407
        %v881 = vmul.f32 %v625, 0.035677407
        %v882 = vmul.f32 %v626, 0.035677407
        %v883 = vmul.f32 %v627, 0.035677407
        %v884 = vmul.f32 %v628, 0.035677407
        %v885 = vmul.f32 %v629, 0.035677407
        %v886 = vmul.f32 %v630, 0.035677407
        %v887 = vmul.f32 %v631, 0.035677407
        %v888 = vmul.f32 %v632, 0.035677407
        %v889 = vmul.f32 %v633, 0.035677407
        %v890 = vmul.f32 %v634, 0.035677407
        %v891 = vmul.f32 %v635, 0.035677407
        %v892 = vmul.f32 %v636, 0.035677407
        %v893 = vmul.f32 %v637, 0.035677407
        %v894 = vmul.f32 %v638, 0.035677407
        %v895 = vmul.f32 %v639, 0.035677407
        %v896 = vmul.f32 %v640, 0.035677407
        %v897 = vmul.f32 %v641, 0.035677407
        %v898 = vmul.f32 %v642, 0.035677407
        %v899 = vmul.f32 %v643, 0.035677407
        %v900 = vmul.f32 %v644, 0.035677407
        %v901 = vmul.f32 %v645, 0.035677407
        %v902 = vmul.f32 %v646, 0.035677407
        %v903 = vmul.f32 %v647, 0.035677407
        %v904 = vmul.f32 %v648, 0.035677407
        %v905 = vmul.f32 %v649, 0.035677407
        %v906 = vmul.f32 %v650, 0.035677407
        %v907 = vmul.f32 %v651, 0.035677407
        %v908 = vadd.f32 %v652, 0.7978846
        %v909 = vadd.f32 %v653, 0.7978846
        %v910 = vadd.f32 %v654, 0.7978846
        %v911 = vadd.f32 %v655, 0.7978846
        %v912 = vadd.f32 %v656, 0.7978846
        %v913 = vadd.f32 %v657, 0.7978846
        %v914 = vadd.f32 %v658, 0.7978846
        %v915 = vadd.f32 %v659, 0.7978846
        %v916 = vadd.f32 %v660, 0.7978846
        %v917 = vadd.f32 %v661, 0.7978846
        %v918 = vadd.f32 %v662, 0.7978846
        %v919 = vadd.f32 %v663, 0.7978846
        %v920 = vadd.f32 %v664, 0.7978846
        %v921 = vadd.f32 %v665, 0.7978846
        %v922 = vadd.f32 %v666, 0.7978846
        %v923 = vadd.f32 %v667, 0.7978846
        %v924 = vadd.f32 %v668, 0.7978846
        %v925 = vadd.f32 %v669, 0.7978846
        %v926 = vadd.f32 %v670, 0.7978846
        %v927 = vadd.f32 %v671, 0.7978846
        %v928 = vadd.f32 %v672, 0.7978846
        %v929 = vadd.f32 %v673, 0.7978846
        %v930 = vadd.f32 %v674, 0.7978846
        %v931 = vadd.f32 %v675, 0.7978846
        %v932 = vadd.f32 %v676, 0.7978846
        %v933 = vadd.f32 %v677, 0.7978846
        %v934 = vadd.f32 %v678, 0.7978846
        %v935 = vadd.f32 %v679, 0.7978846
        %v936 = vadd.f32 %v680, 0.7978846
        %v937 = vadd.f32 %v681, 0.7978846
        %v938 = vadd.f32 %v682, 0.7978846
        %v939 = vadd.f32 %v683, 0.7978846
        %v940 = vadd.f32 %v684, 0.7978846
        %v941 = vadd.f32 %v685, 0.7978846
        %v942 = vadd.f32 %v686, 0.7978846
        %v943 = vadd.f32 %v687, 0.7978846
        %v944 = vadd.f32 %v688, 0.7978846
        %v945 = vadd.f32 %v689, 0.7978846
        %v946 = vadd.f32 %v690, 0.7978846
        %v947 = vadd.f32 %v691, 0.7978846
        %v948 = vadd.f32 %v692, 0.7978846
        %v949 = vadd.f32 %v693, 0.7978846
        %v950 = vadd.f32 %v694, 0.7978846
        %v951 = vadd.f32 %v695, 0.7978846
        %v952 = vadd.f32 %v696, 0.7978846
        %v953 = vadd.f32 %v697, 0.7978846
        %v954 = vadd.f32 %v698, 0.7978846
        %v955 = vadd.f32 %v699, 0.7978846
        %v956 = vadd.f32 %v700, 0.7978846
        %v957 = vadd.f32 %v701, 0.7978846
        %v958 = vadd.f32 %v702, 0.7978846
        %v959 = vadd.f32 %v703, 0.7978846
        %v960 = vadd.f32 %v704, 0.7978846
        %v961 = vadd.f32 %v705, 0.7978846
        %v962 = vadd.f32 %v706, 0.7978846
        %v963 = vadd.f32 %v707, 0.7978846
        %v964 = vadd.f32 %v708, 0.7978846
        %v965 = vadd.f32 %v709, 0.7978846
        %v966 = vadd.f32 %v710, 0.7978846
        %v967 = vadd.f32 %v711, 0.7978846
        %v968 = vadd.f32 %v712, 0.7978846
        %v969 = vadd.f32 %v713, 0.7978846
        %v970 = vadd.f32 %v714, 0.7978846
        %v971 = vadd.f32 %v715, 0.7978846
        %v972 = vadd.f32 %v716, 0.7978846
        %v973 = vadd.f32 %v717, 0.7978846
        %v974 = vadd.f32 %v718, 0.7978846
        %v975 = vadd.f32 %v719, 0.7978846
        %v976 = vadd.f32 %v720, 0.7978846
        %v977 = vadd.f32 %v721, 0.7978846
        %v978 = vadd.f32 %v722, 0.7978846
        %v979 = vadd.f32 %v723, 0.7978846
        %v980 = vadd.f32 %v724, 0.7978846
        %v981 = vadd.f32 %v725, 0.7978846
        %v982 = vadd.f32 %v726, 0.7978846
        %v983 = vadd.f32 %v727, 0.7978846
        %v984 = vadd.f32 %v728, 0.7978846
        %v985 = vadd.f32 %v729, 0.7978846
        %v986 = vadd.f32 %v730, 0.7978846
        %v987 = vadd.f32 %v731, 0.7978846
        %v988 = vadd.f32 %v732, 0.7978846
        %v989 = vadd.f32 %v733, 0.7978846
        %v990 = vadd.f32 %v734, 0.7978846
        %v991 = vadd.f32 %v735, 0.7978846
        %v992 = vadd.f32 %v736, 0.7978846
        %v993 = vadd.f32 %v737, 0.7978846
        %v994 = vadd.f32 %v738, 0.7978846
        %v995 = vadd.f32 %v739, 0.7978846
        %v996 = vadd.f32 %v740, 0.7978846
        %v997 = vadd.f32 %v741, 0.7978846
        %v998 = vadd.f32 %v742, 0.7978846
        %v999 = vadd.f32 %v743, 0.7978846
        %v1000 = vadd.f32 %v744, 0.7978846
        %v1001 = vadd.f32 %v745, 0.7978846
        %v1002 = vadd.f32 %v746, 0.7978846
        %v1003 = vadd.f32 %v747, 0.7978846
        %v1004 = vadd.f32 %v748, 0.7978846
        %v1005 = vadd.f32 %v749, 0.7978846
        %v1006 = vadd.f32 %v750, 0.7978846
        %v1007 = vadd.f32 %v751, 0.7978846
        %v1008 = vadd.f32 %v752, 0.7978846
        %v1009 = vadd.f32 %v753, 0.7978846
        %v1010 = vadd.f32 %v754, 0.7978846
        %v1011 = vadd.f32 %v755, 0.7978846
        %v1012 = vadd.f32 %v756, 0.7978846
        %v1013 = vadd.f32 %v757, 0.7978846
        %v1014 = vadd.f32 %v758, 0.7978846
        %v1015 = vadd.f32 %v759, 0.7978846
        %v1016 = vadd.f32 %v760, 0.7978846
        %v1017 = vadd.f32 %v761, 0.7978846
        %v1018 = vadd.f32 %v762, 0.7978846
        %v1019 = vadd.f32 %v763, 0.7978846
        %v1020 = vadd.f32 %v764, 0.7978846
        %v1021 = vadd.f32 %v765, 0.7978846
        %v1022 = vadd.f32 %v766, 0.7978846
        %v1023 = vadd.f32 %v767, 0.7978846
        %v1024 = vadd.f32 %v768, 0.7978846
        %v1025 = vadd.f32 %v769, 0.7978846
        %v1026 = vadd.f32 %v770, 0.7978846
        %v1027 = vadd.f32 %v771, 0.7978846
        %v1028 = vadd.f32 %v772, 0.7978846
        %v1029 = vadd.f32 %v773, 0.7978846
        %v1030 = vadd.f32 %v774, 0.7978846
        %v1031 = vadd.f32 %v775, 0.7978846
        %v1032 = vadd.f32 %v776, 0.7978846
        %v1033 = vadd.f32 %v777, 0.7978846
        %v1034 = vadd.f32 %v778, 0.7978846
        %v1035 = vadd.f32 %v779, 0.7978846
        %v1036 = vadd.f32 %v780, 0.7978846
        %v1037 = vadd.f32 %v781, 0.7978846
        %v1038 = vadd.f32 %v782, 0.7978846
        %v1039 = vadd.f32 %v783, 0.7978846
        %v1040 = vadd.f32 %v784, 0.7978846
        %v1041 = vadd.f32 %v785, 0.7978846
        %v1042 = vadd.f32 %v786, 0.7978846
        %v1043 = vadd.f32 %v787, 0.7978846
        %v1044 = vadd.f32 %v788, 0.7978846
        %v1045 = vadd.f32 %v789, 0.7978846
        %v1046 = vadd.f32 %v790, 0.7978846
        %v1047 = vadd.f32 %v791, 0.7978846
        %v1048 = vadd.f32 %v792, 0.7978846
        %v1049 = vadd.f32 %v793, 0.7978846
        %v1050 = vadd.f32 %v794, 0.7978846
        %v1051 = vadd.f32 %v795, 0.7978846
        %v1052 = vadd.f32 %v796, 0.7978846
        %v1053 = vadd.f32 %v797, 0.7978846
        %v1054 = vadd.f32 %v798, 0.7978846
        %v1055 = vadd.f32 %v799, 0.7978846
        %v1056 = vadd.f32 %v800, 0.7978846
        %v1057 = vadd.f32 %v801, 0.7978846
        %v1058 = vadd.f32 %v802, 0.7978846
        %v1059 = vadd.f32 %v803, 0.7978846
        %v1060 = vadd.f32 %v804, 0.7978846
        %v1061 = vadd.f32 %v805, 0.7978846
        %v1062 = vadd.f32 %v806, 0.7978846
        %v1063 = vadd.f32 %v807, 0.7978846
        %v1064 = vadd.f32 %v808, 0.7978846
        %v1065 = vadd.f32 %v809, 0.7978846
        %v1066 = vadd.f32 %v810, 0.7978846
        %v1067 = vadd.f32 %v811, 0.7978846
        %v1068 = vadd.f32 %v812, 0.7978846
        %v1069 = vadd.f32 %v813, 0.7978846
        %v1070 = vadd.f32 %v814, 0.7978846
        %v1071 = vadd.f32 %v815, 0.7978846
        %v1072 = vadd.f32 %v816, 0.7978846
        %v1073 = vadd.f32 %v817, 0.7978846
        %v1074 = vadd.f32 %v818, 0.7978846
        %v1075 = vadd.f32 %v819, 0.7978846
        %v1076 = vadd.f32 %v820, 0.7978846
        %v1077 = vadd.f32 %v821, 0.7978846
        %v1078 = vadd.f32 %v822, 0.7978846
        %v1079 = vadd.f32 %v823, 0.7978846
        %v1080 = vadd.f32 %v824, 0.7978846
        %v1081 = vadd.f32 %v825, 0.7978846
        %v1082 = vadd.f32 %v826, 0.7978846
        %v1083 = vadd.f32 %v827, 0.7978846
        %v1084 = vadd.f32 %v828, 0.7978846
        %v1085 = vadd.f32 %v829, 0.7978846
        %v1086 = vadd.f32 %v830, 0.7978846
        %v1087 = vadd.f32 %v831, 0.7978846
        %v1088 = vadd.f32 %v832, 0.7978846
        %v1089 = vadd.f32 %v833, 0.7978846
        %v1090 = vadd.f32 %v834, 0.7978846
        %v1091 = vadd.f32 %v835, 0.7978846
        %v1092 = vadd.f32 %v836, 0.7978846
        %v1093 = vadd.f32 %v837, 0.7978846
        %v1094 = vadd.f32 %v838, 0.7978846
        %v1095 = vadd.f32 %v839, 0.7978846
        %v1096 = vadd.f32 %v840, 0.7978846
        %v1097 = vadd.f32 %v841, 0.7978846
        %v1098 = vadd.f32 %v842, 0.7978846
        %v1099 = vadd.f32 %v843, 0.7978846
        %v1100 = vadd.f32 %v844, 0.7978846
        %v1101 = vadd.f32 %v845, 0.7978846
        %v1102 = vadd.f32 %v846, 0.7978846
        %v1103 = vadd.f32 %v847, 0.7978846
        %v1104 = vadd.f32 %v848, 0.7978846
        %v1105 = vadd.f32 %v849, 0.7978846
        %v1106 = vadd.f32 %v850, 0.7978846
        %v1107 = vadd.f32 %v851, 0.7978846
        %v1108 = vadd.f32 %v852, 0.7978846
        %v1109 = vadd.f32 %v853, 0.7978846
        %v1110 = vadd.f32 %v854, 0.7978846
        %v1111 = vadd.f32 %v855, 0.7978846
        %v1112 = vadd.f32 %v856, 0.7978846
        %v1113 = vadd.f32 %v857, 0.7978846
        %v1114 = vadd.f32 %v858, 0.7978846
        %v1115 = vadd.f32 %v859, 0.7978846
        %v1116 = vadd.f32 %v860, 0.7978846
        %v1117 = vadd.f32 %v861, 0.7978846
        %v1118 = vadd.f32 %v862, 0.7978846
        %v1119 = vadd.f32 %v863, 0.7978846
        %v1120 = vadd.f32 %v864, 0.7978846
        %v1121 = vadd.f32 %v865, 0.7978846
        %v1122 = vadd.f32 %v866, 0.7978846
        %v1123 = vadd.f32 %v867, 0.7978846
        %v1124 = vadd.f32 %v868, 0.7978846
        %v1125 = vadd.f32 %v869, 0.7978846
        %v1126 = vadd.f32 %v870, 0.7978846
        %v1127 = vadd.f32 %v871, 0.7978846
        %v1128 = vadd.f32 %v872, 0.7978846
        %v1129 = vadd.f32 %v873, 0.7978846
        %v1130 = vadd.f32 %v874, 0.7978846
        %v1131 = vadd.f32 %v875, 0.7978846
        %v1132 = vadd.f32 %v876, 0.7978846
        %v1133 = vadd.f32 %v877, 0.7978846
        %v1134 = vadd.f32 %v878, 0.7978846
        %v1135 = vadd.f32 %v879, 0.7978846
        %v1136 = vadd.f32 %v880, 0.7978846
        %v1137 = vadd.f32 %v881, 0.7978846
        %v1138 = vadd.f32 %v882, 0.7978846
        %v1139 = vadd.f32 %v883, 0.7978846
        %v1140 = vadd.f32 %v884, 0.7978846
        %v1141 = vadd.f32 %v885, 0.7978846
        %v1142 = vadd.f32 %v886, 0.7978846
        %v1143 = vadd.f32 %v887, 0.7978846
        %v1144 = vadd.f32 %v888, 0.7978846
        %v1145 = vadd.f32 %v889, 0.7978846
        %v1146 = vadd.f32 %v890, 0.7978846
        %v1147 = vadd.f32 %v891, 0.7978846
        %v1148 = vadd.f32 %v892, 0.7978846
        %v1149 = vadd.f32 %v893, 0.7978846
        %v1150 = vadd.f32 %v894, 0.7978846
        %v1151 = vadd.f32 %v895, 0.7978846
        %v1152 = vadd.f32 %v896, 0.7978846
        %v1153 = vadd.f32 %v897, 0.7978846
        %v1154 = vadd.f32 %v898, 0.7978846
        %v1155 = vadd.f32 %v899, 0.7978846
        %v1156 = vadd.f32 %v900, 0.7978846
        %v1157 = vadd.f32 %v901, 0.7978846
        %v1158 = vadd.f32 %v902, 0.7978846
        %v1159 = vadd.f32 %v903, 0.7978846
        %v1160 = vadd.f32 %v904, 0.7978846
        %v1161 = vadd.f32 %v905, 0.7978846
        %v1162 = vadd.f32 %v906, 0.7978846
        %v1163 = vadd.f32 %v907, 0.7978846
        %v1164 = vmul.f32 %v140, %v908
        %v1165 = vmul.f32 %v141, %v909
        %v1166 = vmul.f32 %v142, %v910
        %v1167 = vmul.f32 %v143, %v911
        %v1168 = vmul.f32 %v144, %v912
        %v1169 = vmul.f32 %v145, %v913
        %v1170 = vmul.f32 %v146, %v914
        %v1171 = vmul.f32 %v147, %v915
        %v1172 = vmul.f32 %v148, %v916
        %v1173 = vmul.f32 %v149, %v917
        %v1174 = vmul.f32 %v150, %v918
        %v1175 = vmul.f32 %v151, %v919
        %v1176 = vmul.f32 %v152, %v920
        %v1177 = vmul.f32 %v153, %v921
        %v1178 = vmul.f32 %v154, %v922
        %v1179 = vmul.f32 %v155, %v923
        %v1180 = vmul.f32 %v156, %v924
        %v1181 = vmul.f32 %v157, %v925
        %v1182 = vmul.f32 %v158, %v926
        %v1183 = vmul.f32 %v159, %v927
        %v1184 = vmul.f32 %v160, %v928
        %v1185 = vmul.f32 %v161, %v929
        %v1186 = vmul.f32 %v162, %v930
        %v1187 = vmul.f32 %v163, %v931
        %v1188 = vmul.f32 %v164, %v932
        %v1189 = vmul.f32 %v165, %v933
        %v1190 = vmul.f32 %v166, %v934
        %v1191 = vmul.f32 %v167, %v935
        %v1192 = vmul.f32 %v168, %v936
        %v1193 = vmul.f32 %v169, %v937
        %v1194 = vmul.f32 %v170, %v938
        %v1195 = vmul.f32 %v171, %v939
        %v1196 = vmul.f32 %v172, %v940
        %v1197 = vmul.f32 %v173, %v941
        %v1198 = vmul.f32 %v174, %v942
        %v1199 = vmul.f32 %v175, %v943
        %v1200 = vmul.f32 %v176, %v944
        %v1201 = vmul.f32 %v177, %v945
        %v1202 = vmul.f32 %v178, %v946
        %v1203 = vmul.f32 %v179, %v947
        %v1204 = vmul.f32 %v180, %v948
        %v1205 = vmul.f32 %v181, %v949
        %v1206 = vmul.f32 %v182, %v950
        %v1207 = vmul.f32 %v183, %v951
        %v1208 = vmul.f32 %v184, %v952
        %v1209 = vmul.f32 %v185, %v953
        %v1210 = vmul.f32 %v186, %v954
        %v1211 = vmul.f32 %v187, %v955
        %v1212 = vmul.f32 %v188, %v956
        %v1213 = vmul.f32 %v189, %v957
        %v1214 = vmul.f32 %v190, %v958
        %v1215 = vmul.f32 %v191, %v959
        %v1216 = vmul.f32 %v192, %v960
        %v1217 = vmul.f32 %v193, %v961
        %v1218 = vmul.f32 %v194, %v962
        %v1219 = vmul.f32 %v195, %v963
        %v1220 = vmul.f32 %v196, %v964
        %v1221 = vmul.f32 %v197, %v965
        %v1222 = vmul.f32 %v198, %v966
        %v1223 = vmul.f32 %v199, %v967
        %v1224 = vmul.f32 %v200, %v968
        %v1225 = vmul.f32 %v201, %v969
        %v1226 = vmul.f32 %v202, %v970
        %v1227 = vmul.f32 %v203, %v971
        %v1228 = vmul.f32 %v204, %v972
        %v1229 = vmul.f32 %v205, %v973
        %v1230 = vmul.f32 %v206, %v974
        %v1231 = vmul.f32 %v207, %v975
        %v1232 = vmul.f32 %v208, %v976
        %v1233 = vmul.f32 %v209, %v977
        %v1234 = vmul.f32 %v210, %v978
        %v1235 = vmul.f32 %v211, %v979
        %v1236 = vmul.f32 %v212, %v980
        %v1237 = vmul.f32 %v213, %v981
        %v1238 = vmul.f32 %v214, %v982
        %v1239 = vmul.f32 %v215, %v983
        %v1240 = vmul.f32 %v216, %v984
        %v1241 = vmul.f32 %v217, %v985
        %v1242 = vmul.f32 %v218, %v986
        %v1243 = vmul.f32 %v219, %v987
        %v1244 = vmul.f32 %v220, %v988
        %v1245 = vmul.f32 %v221, %v989
        %v1246 = vmul.f32 %v222, %v990
        %v1247 = vmul.f32 %v223, %v991
        %v1248 = vmul.f32 %v224, %v992
        %v1249 = vmul.f32 %v225, %v993
        %v1250 = vmul.f32 %v226, %v994
        %v1251 = vmul.f32 %v227, %v995
        %v1252 = vmul.f32 %v228, %v996
        %v1253 = vmul.f32 %v229, %v997
        %v1254 = vmul.f32 %v230, %v998
        %v1255 = vmul.f32 %v231, %v999
        %v1256 = vmul.f32 %v232, %v1000
        %v1257 = vmul.f32 %v233, %v1001
        %v1258 = vmul.f32 %v234, %v1002
        %v1259 = vmul.f32 %v235, %v1003
        %v1260 = vmul.f32 %v236, %v1004
        %v1261 = vmul.f32 %v237, %v1005
        %v1262 = vmul.f32 %v238, %v1006
        %v1263 = vmul.f32 %v239, %v1007
        %v1264 = vmul.f32 %v240, %v1008
        %v1265 = vmul.f32 %v241, %v1009
        %v1266 = vmul.f32 %v242, %v1010
        %v1267 = vmul.f32 %v243, %v1011
        %v1268 = vmul.f32 %v244, %v1012
        %v1269 = vmul.f32 %v245, %v1013
        %v1270 = vmul.f32 %v246, %v1014
        %v1271 = vmul.f32 %v247, %v1015
        %v1272 = vmul.f32 %v248, %v1016
        %v1273 = vmul.f32 %v249, %v1017
        %v1274 = vmul.f32 %v250, %v1018
        %v1275 = vmul.f32 %v251, %v1019
        %v1276 = vmul.f32 %v252, %v1020
        %v1277 = vmul.f32 %v253, %v1021
        %v1278 = vmul.f32 %v254, %v1022
        %v1279 = vmul.f32 %v255, %v1023
        %v1280 = vmul.f32 %v256, %v1024
        %v1281 = vmul.f32 %v257, %v1025
        %v1282 = vmul.f32 %v258, %v1026
        %v1283 = vmul.f32 %v259, %v1027
        %v1284 = vmul.f32 %v260, %v1028
        %v1285 = vmul.f32 %v261, %v1029
        %v1286 = vmul.f32 %v262, %v1030
        %v1287 = vmul.f32 %v263, %v1031
        %v1288 = vmul.f32 %v264, %v1032
        %v1289 = vmul.f32 %v265, %v1033
        %v1290 = vmul.f32 %v266, %v1034
        %v1291 = vmul.f32 %v267, %v1035
        %v1292 = vmul.f32 %v268, %v1036
        %v1293 = vmul.f32 %v269, %v1037
        %v1294 = vmul.f32 %v270, %v1038
        %v1295 = vmul.f32 %v271, %v1039
        %v1296 = vmul.f32 %v272, %v1040
        %v1297 = vmul.f32 %v273, %v1041
        %v1298 = vmul.f32 %v274, %v1042
        %v1299 = vmul.f32 %v275, %v1043
        %v1300 = vmul.f32 %v276, %v1044
        %v1301 = vmul.f32 %v277, %v1045
        %v1302 = vmul.f32 %v278, %v1046
        %v1303 = vmul.f32 %v279, %v1047
        %v1304 = vmul.f32 %v280, %v1048
        %v1305 = vmul.f32 %v281, %v1049
        %v1306 = vmul.f32 %v282, %v1050
        %v1307 = vmul.f32 %v283, %v1051
        %v1308 = vmul.f32 %v284, %v1052
        %v1309 = vmul.f32 %v285, %v1053
        %v1310 = vmul.f32 %v286, %v1054
        %v1311 = vmul.f32 %v287, %v1055
        %v1312 = vmul.f32 %v288, %v1056
        %v1313 = vmul.f32 %v289, %v1057
        %v1314 = vmul.f32 %v290, %v1058
        %v1315 = vmul.f32 %v291, %v1059
        %v1316 = vmul.f32 %v292, %v1060
        %v1317 = vmul.f32 %v293, %v1061
        %v1318 = vmul.f32 %v294, %v1062
        %v1319 = vmul.f32 %v295, %v1063
        %v1320 = vmul.f32 %v296, %v1064
        %v1321 = vmul.f32 %v297, %v1065
        %v1322 = vmul.f32 %v298, %v1066
        %v1323 = vmul.f32 %v299, %v1067
        %v1324 = vmul.f32 %v300, %v1068
        %v1325 = vmul.f32 %v301, %v1069
        %v1326 = vmul.f32 %v302, %v1070
        %v1327 = vmul.f32 %v303, %v1071
        %v1328 = vmul.f32 %v304, %v1072
        %v1329 = vmul.f32 %v305, %v1073
        %v1330 = vmul.f32 %v306, %v1074
        %v1331 = vmul.f32 %v307, %v1075
        %v1332 = vmul.f32 %v308, %v1076
        %v1333 = vmul.f32 %v309, %v1077
        %v1334 = vmul.f32 %v310, %v1078
        %v1335 = vmul.f32 %v311, %v1079
        %v1336 = vmul.f32 %v312, %v1080
        %v1337 = vmul.f32 %v313, %v1081
        %v1338 = vmul.f32 %v314, %v1082
        %v1339 = vmul.f32 %v315, %v1083
        %v1340 = vmul.f32 %v316, %v1084
        %v1341 = vmul.f32 %v317, %v1085
        %v1342 = vmul.f32 %v318, %v1086
        %v1343 = vmul.f32 %v319, %v1087
        %v1344 = vmul.f32 %v320, %v1088
        %v1345 = vmul.f32 %v321, %v1089
        %v1346 = vmul.f32 %v322, %v1090
        %v1347 = vmul.f32 %v323, %v1091
        %v1348 = vmul.f32 %v324, %v1092
        %v1349 = vmul.f32 %v325, %v1093
        %v1350 = vmul.f32 %v326, %v1094
        %v1351 = vmul.f32 %v327, %v1095
        %v1352 = vmul.f32 %v328, %v1096
        %v1353 = vmul.f32 %v329, %v1097
        %v1354 = vmul.f32 %v330, %v1098
        %v1355 = vmul.f32 %v331, %v1099
        %v1356 = vmul.f32 %v332, %v1100
        %v1357 = vmul.f32 %v333, %v1101
        %v1358 = vmul.f32 %v334, %v1102
        %v1359 = vmul.f32 %v335, %v1103
        %v1360 = vmul.f32 %v336, %v1104
        %v1361 = vmul.f32 %v337, %v1105
        %v1362 = vmul.f32 %v338, %v1106
        %v1363 = vmul.f32 %v339, %v1107
        %v1364 = vmul.f32 %v340, %v1108
        %v1365 = vmul.f32 %v341, %v1109
        %v1366 = vmul.f32 %v342, %v1110
        %v1367 = vmul.f32 %v343, %v1111
        %v1368 = vmul.f32 %v344, %v1112
        %v1369 = vmul.f32 %v345, %v1113
        %v1370 = vmul.f32 %v346, %v1114
        %v1371 = vmul.f32 %v347, %v1115
        %v1372 = vmul.f32 %v348, %v1116
        %v1373 = vmul.f32 %v349, %v1117
        %v1374 = vmul.f32 %v350, %v1118
        %v1375 = vmul.f32 %v351, %v1119
        %v1376 = vmul.f32 %v352, %v1120
        %v1377 = vmul.f32 %v353, %v1121
        %v1378 = vmul.f32 %v354, %v1122
        %v1379 = vmul.f32 %v355, %v1123
        %v1380 = vmul.f32 %v356, %v1124
        %v1381 = vmul.f32 %v357, %v1125
        %v1382 = vmul.f32 %v358, %v1126
        %v1383 = vmul.f32 %v359, %v1127
        %v1384 = vmul.f32 %v360, %v1128
        %v1385 = vmul.f32 %v361, %v1129
        %v1386 = vmul.f32 %v362, %v1130
        %v1387 = vmul.f32 %v363, %v1131
        %v1388 = vmul.f32 %v364, %v1132
        %v1389 = vmul.f32 %v365, %v1133
        %v1390 = vmul.f32 %v366, %v1134
        %v1391 = vmul.f32 %v367, %v1135
        %v1392 = vmul.f32 %v368, %v1136
        %v1393 = vmul.f32 %v369, %v1137
        %v1394 = vmul.f32 %v370, %v1138
        %v1395 = vmul.f32 %v371, %v1139
        %v1396 = vmul.f32 %v372, %v1140
        %v1397 = vmul.f32 %v373, %v1141
        %v1398 = vmul.f32 %v374, %v1142
        %v1399 = vmul.f32 %v375, %v1143
        %v1400 = vmul.f32 %v376, %v1144
        %v1401 = vmul.f32 %v377, %v1145
        %v1402 = vmul.f32 %v378, %v1146
        %v1403 = vmul.f32 %v379, %v1147
        %v1404 = vmul.f32 %v380, %v1148
        %v1405 = vmul.f32 %v381, %v1149
        %v1406 = vmul.f32 %v382, %v1150
        %v1407 = vmul.f32 %v383, %v1151
        %v1408 = vmul.f32 %v384, %v1152
        %v1409 = vmul.f32 %v385, %v1153
        %v1410 = vmul.f32 %v386, %v1154
        %v1411 = vmul.f32 %v387, %v1155
        %v1412 = vmul.f32 %v388, %v1156
        %v1413 = vmul.f32 %v389, %v1157
        %v1414 = vmul.f32 %v390, %v1158
        %v1415 = vmul.f32 %v391, %v1159
        %v1416 = vmul.f32 %v392, %v1160
        %v1417 = vmul.f32 %v393, %v1161
        %v1418 = vmul.f32 %v394, %v1162
        %v1419 = vmul.f32 %v395, %v1163
        %v1420 = vtanh.pop %v1164
        %v1421 = vtanh.pop %v1165
        %v1422 = vtanh.pop %v1166
        %v1423 = vtanh.pop %v1167
        %v1424 = vtanh.pop %v1168
        %v1425 = vtanh.pop %v1169
        %v1426 = vtanh.pop %v1170
        %v1427 = vtanh.pop %v1171
        %v1428 = vtanh.pop %v1172
        %v1429 = vtanh.pop %v1173
        %v1430 = vtanh.pop %v1174
        %v1431 = vtanh.pop %v1175
        %v1432 = vtanh.pop %v1176
        %v1433 = vtanh.pop %v1177
        %v1434 = vtanh.pop %v1178
        %v1435 = vtanh.pop %v1179
        %v1436 = vtanh.pop %v1180
        %v1437 = vtanh.pop %v1181
        %v1438 = vtanh.pop %v1182
        %v1439 = vtanh.pop %v1183
        %v1440 = vtanh.pop %v1184
        %v1441 = vtanh.pop %v1185
        %v1442 = vtanh.pop %v1186
        %v1443 = vtanh.pop %v1187
        %v1444 = vtanh.pop %v1188
        %v1445 = vtanh.pop %v1189
        %v1446 = vtanh.pop %v1190
        %v1447 = vtanh.pop %v1191
        %v1448 = vtanh.pop %v1192
        %v1449 = vtanh.pop %v1193
        %v1450 = vtanh.pop %v1194
        %v1451 = vtanh.pop %v1195
        %v1452 = vtanh.pop %v1196
        %v1453 = vtanh.pop %v1197
        %v1454 = vtanh.pop %v1198
        %v1455 = vtanh.pop %v1199
        %v1456 = vtanh.pop %v1200
        %v1457 = vtanh.pop %v1201
        %v1458 = vtanh.pop %v1202
        %v1459 = vtanh.pop %v1203
        %v1460 = vtanh.pop %v1204
        %v1461 = vtanh.pop %v1205
        %v1462 = vtanh.pop %v1206
        %v1463 = vtanh.pop %v1207
        %v1464 = vtanh.pop %v1208
        %v1465 = vtanh.pop %v1209
        %v1466 = vtanh.pop %v1210
        %v1467 = vtanh.pop %v1211
        %v1468 = vtanh.pop %v1212
        %v1469 = vtanh.pop %v1213
        %v1470 = vtanh.pop %v1214
        %v1471 = vtanh.pop %v1215
        %v1472 = vtanh.pop %v1216
        %v1473 = vtanh.pop %v1217
        %v1474 = vtanh.pop %v1218
        %v1475 = vtanh.pop %v1219
        %v1476 = vtanh.pop %v1220
        %v1477 = vtanh.pop %v1221
        %v1478 = vtanh.pop %v1222
        %v1479 = vtanh.pop %v1223
        %v1480 = vtanh.pop %v1224
        %v1481 = vtanh.pop %v1225
        %v1482 = vtanh.pop %v1226
        %v1483 = vtanh.pop %v1227
        %v1484 = vtanh.pop %v1228
        %v1485 = vtanh.pop %v1229
        %v1486 = vtanh.pop %v1230
        %v1487 = vtanh.pop %v1231
        %v1488 = vtanh.pop %v1232
        %v1489 = vtanh.pop %v1233
        %v1490 = vtanh.pop %v1234
        %v1491 = vtanh.pop %v1235
        %v1492 = vtanh.pop %v1236
        %v1493 = vtanh.pop %v1237
        %v1494 = vtanh.pop %v1238
        %v1495 = vtanh.pop %v1239
        %v1496 = vtanh.pop %v1240
        %v1497 = vtanh.pop %v1241
        %v1498 = vtanh.pop %v1242
        %v1499 = vtanh.pop %v1243
        %v1500 = vtanh.pop %v1244
        %v1501 = vtanh.pop %v1245
        %v1502 = vtanh.pop %v1246
        %v1503 = vtanh.pop %v1247
        %v1504 = vtanh.pop %v1248
        %v1505 = vtanh.pop %v1249
        %v1506 = vtanh.pop %v1250
        %v1507 = vtanh.pop %v1251
        %v1508 = vtanh.pop %v1252
        %v1509 = vtanh.pop %v1253
        %v1510 = vtanh.pop %v1254
        %v1511 = vtanh.pop %v1255
        %v1512 = vtanh.pop %v1256
        %v1513 = vtanh.pop %v1257
        %v1514 = vtanh.pop %v1258
        %v1515 = vtanh.pop %v1259
        %v1516 = vtanh.pop %v1260
        %v1517 = vtanh.pop %v1261
        %v1518 = vtanh.pop %v1262
        %v1519 = vtanh.pop %v1263
        %v1520 = vtanh.pop %v1264
        %v1521 = vtanh.pop %v1265
        %v1522 = vtanh.pop %v1266
        %v1523 = vtanh.pop %v1267
        %v1524 = vtanh.pop %v1268
        %v1525 = vtanh.pop %v1269
        %v1526 = vtanh.pop %v1270
        %v1527 = vtanh.pop %v1271
        %v1528 = vtanh.pop %v1272
        %v1529 = vtanh.pop %v1273
        %v1530 = vtanh.pop %v1274
        %v1531 = vtanh.pop %v1275
        %v1532 = vtanh.pop %v1276
        %v1533 = vtanh.pop %v1277
        %v1534 = vtanh.pop %v1278
        %v1535 = vtanh.pop %v1279
        %v1536 = vtanh.pop %v1280
        %v1537 = vtanh.pop %v1281
        %v1538 = vtanh.pop %v1282
        %v1539 = vtanh.pop %v1283
        %v1540 = vtanh.pop %v1284
        %v1541 = vtanh.pop %v1285
        %v1542 = vtanh.pop %v1286
        %v1543 = vtanh.pop %v1287
        %v1544 = vtanh.pop %v1288
        %v1545 = vtanh.pop %v1289
        %v1546 = vtanh.pop %v1290
        %v1547 = vtanh.pop %v1291
        %v1548 = vtanh.pop %v1292
        %v1549 = vtanh.pop %v1293
        %v1550 = vtanh.pop %v1294
        %v1551 = vtanh.pop %v1295
        %v1552 = vtanh.pop %v1296
        %v1553 = vtanh.pop %v1297
        %v1554 = vtanh.pop %v1298
        %v1555 = vtanh.pop %v1299
        %v1556 = vtanh.pop %v1300
        %v1557 = vtanh.pop %v1301
        %v1558 = vtanh.pop %v1302
        %v1559 = vtanh.pop %v1303
        %v1560 = vtanh.pop %v1304
        %v1561 = vtanh.pop %v1305
        %v1562 = vtanh.pop %v1306
        %v1563 = vtanh.pop %v1307
        %v1564 = vtanh.pop %v1308
        %v1565 = vtanh.pop %v1309
        %v1566 = vtanh.pop %v1310
        %v1567 = vtanh.pop %v1311
        %v1568 = vtanh.pop %v1312
        %v1569 = vtanh.pop %v1313
        %v1570 = vtanh.pop %v1314
        %v1571 = vtanh.pop %v1315
        %v1572 = vtanh.pop %v1316
        %v1573 = vtanh.pop %v1317
        %v1574 = vtanh.pop %v1318
        %v1575 = vtanh.pop %v1319
        %v1576 = vtanh.pop %v1320
        %v1577 = vtanh.pop %v1321
        %v1578 = vtanh.pop %v1322
        %v1579 = vtanh.pop %v1323
        %v1580 = vtanh.pop %v1324
        %v1581 = vtanh.pop %v1325
        %v1582 = vtanh.pop %v1326
        %v1583 = vtanh.pop %v1327
        %v1584 = vtanh.pop %v1328
        %v1585 = vtanh.pop %v1329
        %v1586 = vtanh.pop %v1330
        %v1587 = vtanh.pop %v1331
        %v1588 = vtanh.pop %v1332
        %v1589 = vtanh.pop %v1333
        %v1590 = vtanh.pop %v1334
        %v1591 = vtanh.pop %v1335
        %v1592 = vtanh.pop %v1336
        %v1593 = vtanh.pop %v1337
        %v1594 = vtanh.pop %v1338
        %v1595 = vtanh.pop %v1339
        %v1596 = vtanh.pop %v1340
        %v1597 = vtanh.pop %v1341
        %v1598 = vtanh.pop %v1342
        %v1599 = vtanh.pop %v1343
        %v1600 = vtanh.pop %v1344
        %v1601 = vtanh.pop %v1345
        %v1602 = vtanh.pop %v1346
        %v1603 = vtanh.pop %v1347
        %v1604 = vtanh.pop %v1348
        %v1605 = vtanh.pop %v1349
        %v1606 = vtanh.pop %v1350
        %v1607 = vtanh.pop %v1351
        %v1608 = vtanh.pop %v1352
        %v1609 = vtanh.pop %v1353
        %v1610 = vtanh.pop %v1354
        %v1611 = vtanh.pop %v1355
        %v1612 = vtanh.pop %v1356
        %v1613 = vtanh.pop %v1357
        %v1614 = vtanh.pop %v1358
        %v1615 = vtanh.pop %v1359
        %v1616 = vtanh.pop %v1360
        %v1617 = vtanh.pop %v1361
        %v1618 = vtanh.pop %v1362
        %v1619 = vtanh.pop %v1363
        %v1620 = vtanh.pop %v1364
        %v1621 = vtanh.pop %v1365
        %v1622 = vtanh.pop %v1366
        %v1623 = vtanh.pop %v1367
        %v1624 = vtanh.pop %v1368
        %v1625 = vtanh.pop %v1369
        %v1626 = vtanh.pop %v1370
        %v1627 = vtanh.pop %v1371
        %v1628 = vtanh.pop %v1372
        %v1629 = vtanh.pop %v1373
        %v1630 = vtanh.pop %v1374
        %v1631 = vtanh.pop %v1375
        %v1632 = vtanh.pop %v1376
        %v1633 = vtanh.pop %v1377
        %v1634 = vtanh.pop %v1378
        %v1635 = vtanh.pop %v1379
        %v1636 = vtanh.pop %v1380
        %v1637 = vtanh.pop %v1381
        %v1638 = vtanh.pop %v1382
        %v1639 = vtanh.pop %v1383
        %v1640 = vtanh.pop %v1384
        %v1641 = vtanh.pop %v1385
        %v1642 = vtanh.pop %v1386
        %v1643 = vtanh.pop %v1387
        %v1644 = vtanh.pop %v1388
        %v1645 = vtanh.pop %v1389
        %v1646 = vtanh.pop %v1390
        %v1647 = vtanh.pop %v1391
        %v1648 = vtanh.pop %v1392
        %v1649 = vtanh.pop %v1393
        %v1650 = vtanh.pop %v1394
        %v1651 = vtanh.pop %v1395
        %v1652 = vtanh.pop %v1396
        %v1653 = vtanh.pop %v1397
        %v1654 = vtanh.pop %v1398
        %v1655 = vtanh.pop %v1399
        %v1656 = vtanh.pop %v1400
        %v1657 = vtanh.pop %v1401
        %v1658 = vtanh.pop %v1402
        %v1659 = vtanh.pop %v1403
        %v1660 = vtanh.pop %v1404
        %v1661 = vtanh.pop %v1405
        %v1662 = vtanh.pop %v1406
        %v1663 = vtanh.pop %v1407
        %v1664 = vtanh.pop %v1408
        %v1665 = vtanh.pop %v1409
        %v1666 = vtanh.pop %v1410
        %v1667 = vtanh.pop %v1411
        %v1668 = vtanh.pop %v1412
        %v1669 = vtanh.pop %v1413
        %v1670 = vtanh.pop %v1414
        %v1671 = vtanh.pop %v1415
        %v1672 = vtanh.pop %v1416
        %v1673 = vtanh.pop %v1417
        %v1674 = vtanh.pop %v1418
        %v1675 = vtanh.pop %v1419
        %v1676 = vmul.f32 %v1420, 0.5
        %v1677 = vmul.f32 %v1421, 0.5
        %v1678 = vmul.f32 %v1422, 0.5
        %v1679 = vmul.f32 %v1423, 0.5
        %v1680 = vmul.f32 %v1424, 0.5
        %v1681 = vmul.f32 %v1425, 0.5
        %v1682 = vmul.f32 %v1426, 0.5
        %v1683 = vmul.f32 %v1427, 0.5
        %v1684 = vmul.f32 %v1428, 0.5
        %v1685 = vmul.f32 %v1429, 0.5
        %v1686 = vmul.f32 %v1430, 0.5
        %v1687 = vmul.f32 %v1431, 0.5
        %v1688 = vmul.f32 %v1432, 0.5
        %v1689 = vmul.f32 %v1433, 0.5
        %v1690 = vmul.f32 %v1434, 0.5
        %v1691 = vmul.f32 %v1435, 0.5
        %v1692 = vmul.f32 %v1436, 0.5
        %v1693 = vmul.f32 %v1437, 0.5
        %v1694 = vmul.f32 %v1438, 0.5
        %v1695 = vmul.f32 %v1439, 0.5
        %v1696 = vmul.f32 %v1440, 0.5
        %v1697 = vmul.f32 %v1441, 0.5
        %v1698 = vmul.f32 %v1442, 0.5
        %v1699 = vmul.f32 %v1443, 0.5
        %v1700 = vmul.f32 %v1444, 0.5
        %v1701 = vmul.f32 %v1445, 0.5
        %v1702 = vmul.f32 %v1446, 0.5
        %v1703 = vmul.f32 %v1447, 0.5
        %v1704 = vmul.f32 %v1448, 0.5
        %v1705 = vmul.f32 %v1449, 0.5
        %v1706 = vmul.f32 %v1450, 0.5
        %v1707 = vmul.f32 %v1451, 0.5
        %v1708 = vmul.f32 %v1452, 0.5
        %v1709 = vmul.f32 %v1453, 0.5
        %v1710 = vmul.f32 %v1454, 0.5
        %v1711 = vmul.f32 %v1455, 0.5
        %v1712 = vmul.f32 %v1456, 0.5
        %v1713 = vmul.f32 %v1457, 0.5
        %v1714 = vmul.f32 %v1458, 0.5
        %v1715 = vmul.f32 %v1459, 0.5
        %v1716 = vmul.f32 %v1460, 0.5
        %v1717 = vmul.f32 %v1461, 0.5
        %v1718 = vmul.f32 %v1462, 0.5
        %v1719 = vmul.f32 %v1463, 0.5
        %v1720 = vmul.f32 %v1464, 0.5
        %v1721 = vmul.f32 %v1465, 0.5
        %v1722 = vmul.f32 %v1466, 0.5
        %v1723 = vmul.f32 %v1467, 0.5
        %v1724 = vmul.f32 %v1468, 0.5
        %v1725 = vmul.f32 %v1469, 0.5
        %v1726 = vmul.f32 %v1470, 0.5
        %v1727 = vmul.f32 %v1471, 0.5
        %v1728 = vmul.f32 %v1472, 0.5
        %v1729 = vmul.f32 %v1473, 0.5
        %v1730 = vmul.f32 %v1474, 0.5
        %v1731 = vmul.f32 %v1475, 0.5
        %v1732 = vmul.f32 %v1476, 0.5
        %v1733 = vmul.f32 %v1477, 0.5
        %v1734 = vmul.f32 %v1478, 0.5
        %v1735 = vmul.f32 %v1479, 0.5
        %v1736 = vmul.f32 %v1480, 0.5
        %v1737 = vmul.f32 %v1481, 0.5
        %v1738 = vmul.f32 %v1482, 0.5
        %v1739 = vmul.f32 %v1483, 0.5
        %v1740 = vmul.f32 %v1484, 0.5
        %v1741 = vmul.f32 %v1485, 0.5
        %v1742 = vmul.f32 %v1486, 0.5
        %v1743 = vmul.f32 %v1487, 0.5
        %v1744 = vmul.f32 %v1488, 0.5
        %v1745 = vmul.f32 %v1489, 0.5
        %v1746 = vmul.f32 %v1490, 0.5
        %v1747 = vmul.f32 %v1491, 0.5
        %v1748 = vmul.f32 %v1492, 0.5
        %v1749 = vmul.f32 %v1493, 0.5
        %v1750 = vmul.f32 %v1494, 0.5
        %v1751 = vmul.f32 %v1495, 0.5
        %v1752 = vmul.f32 %v1496, 0.5
        %v1753 = vmul.f32 %v1497, 0.5
        %v1754 = vmul.f32 %v1498, 0.5
        %v1755 = vmul.f32 %v1499, 0.5
        %v1756 = vmul.f32 %v1500, 0.5
        %v1757 = vmul.f32 %v1501, 0.5
        %v1758 = vmul.f32 %v1502, 0.5
        %v1759 = vmul.f32 %v1503, 0.5
        %v1760 = vmul.f32 %v1504, 0.5
        %v1761 = vmul.f32 %v1505, 0.5
        %v1762 = vmul.f32 %v1506, 0.5
        %v1763 = vmul.f32 %v1507, 0.5
        %v1764 = vmul.f32 %v1508, 0.5
        %v1765 = vmul.f32 %v1509, 0.5
        %v1766 = vmul.f32 %v1510, 0.5
        %v1767 = vmul.f32 %v1511, 0.5
        %v1768 = vmul.f32 %v1512, 0.5
        %v1769 = vmul.f32 %v1513, 0.5
        %v1770 = vmul.f32 %v1514, 0.5
        %v1771 = vmul.f32 %v1515, 0.5
        %v1772 = vmul.f32 %v1516, 0.5
        %v1773 = vmul.f32 %v1517, 0.5
        %v1774 = vmul.f32 %v1518, 0.5
        %v1775 = vmul.f32 %v1519, 0.5
        %v1776 = vmul.f32 %v1520, 0.5
        %v1777 = vmul.f32 %v1521, 0.5
        %v1778 = vmul.f32 %v1522, 0.5
        %v1779 = vmul.f32 %v1523, 0.5
        %v1780 = vmul.f32 %v1524, 0.5
        %v1781 = vmul.f32 %v1525, 0.5
        %v1782 = vmul.f32 %v1526, 0.5
        %v1783 = vmul.f32 %v1527, 0.5
        %v1784 = vmul.f32 %v1528, 0.5
        %v1785 = vmul.f32 %v1529, 0.5
        %v1786 = vmul.f32 %v1530, 0.5
        %v1787 = vmul.f32 %v1531, 0.5
        %v1788 = vmul.f32 %v1532, 0.5
        %v1789 = vmul.f32 %v1533, 0.5
        %v1790 = vmul.f32 %v1534, 0.5
        %v1791 = vmul.f32 %v1535, 0.5
        %v1792 = vmul.f32 %v1536, 0.5
        %v1793 = vmul.f32 %v1537, 0.5
        %v1794 = vmul.f32 %v1538, 0.5
        %v1795 = vmul.f32 %v1539, 0.5
        %v1796 = vmul.f32 %v1540, 0.5
        %v1797 = vmul.f32 %v1541, 0.5
        %v1798 = vmul.f32 %v1542, 0.5
        %v1799 = vmul.f32 %v1543, 0.5
        %v1800 = vmul.f32 %v1544, 0.5
        %v1801 = vmul.f32 %v1545, 0.5
        %v1802 = vmul.f32 %v1546, 0.5
        %v1803 = vmul.f32 %v1547, 0.5
        %v1804 = vmul.f32 %v1548, 0.5
        %v1805 = vmul.f32 %v1549, 0.5
        %v1806 = vmul.f32 %v1550, 0.5
        %v1807 = vmul.f32 %v1551, 0.5
        %v1808 = vmul.f32 %v1552, 0.5
        %v1809 = vmul.f32 %v1553, 0.5
        %v1810 = vmul.f32 %v1554, 0.5
        %v1811 = vmul.f32 %v1555, 0.5
        %v1812 = vmul.f32 %v1556, 0.5
        %v1813 = vmul.f32 %v1557, 0.5
        %v1814 = vmul.f32 %v1558, 0.5
        %v1815 = vmul.f32 %v1559, 0.5
        %v1816 = vmul.f32 %v1560, 0.5
        %v1817 = vmul.f32 %v1561, 0.5
        %v1818 = vmul.f32 %v1562, 0.5
        %v1819 = vmul.f32 %v1563, 0.5
        %v1820 = vmul.f32 %v1564, 0.5
        %v1821 = vmul.f32 %v1565, 0.5
        %v1822 = vmul.f32 %v1566, 0.5
        %v1823 = vmul.f32 %v1567, 0.5
        %v1824 = vmul.f32 %v1568, 0.5
        %v1825 = vmul.f32 %v1569, 0.5
        %v1826 = vmul.f32 %v1570, 0.5
        %v1827 = vmul.f32 %v1571, 0.5
        %v1828 = vmul.f32 %v1572, 0.5
        %v1829 = vmul.f32 %v1573, 0.5
        %v1830 = vmul.f32 %v1574, 0.5
        %v1831 = vmul.f32 %v1575, 0.5
        %v1832 = vmul.f32 %v1576, 0.5
        %v1833 = vmul.f32 %v1577, 0.5
        %v1834 = vmul.f32 %v1578, 0.5
        %v1835 = vmul.f32 %v1579, 0.5
        %v1836 = vmul.f32 %v1580, 0.5
        %v1837 = vmul.f32 %v1581, 0.5
        %v1838 = vmul.f32 %v1582, 0.5
        %v1839 = vmul.f32 %v1583, 0.5
        %v1840 = vmul.f32 %v1584, 0.5
        %v1841 = vmul.f32 %v1585, 0.5
        %v1842 = vmul.f32 %v1586, 0.5
        %v1843 = vmul.f32 %v1587, 0.5
        %v1844 = vmul.f32 %v1588, 0.5
        %v1845 = vmul.f32 %v1589, 0.5
        %v1846 = vmul.f32 %v1590, 0.5
        %v1847 = vmul.f32 %v1591, 0.5
        %v1848 = vmul.f32 %v1592, 0.5
        %v1849 = vmul.f32 %v1593, 0.5
        %v1850 = vmul.f32 %v1594, 0.5
        %v1851 = vmul.f32 %v1595, 0.5
        %v1852 = vmul.f32 %v1596, 0.5
        %v1853 = vmul.f32 %v1597, 0.5
        %v1854 = vmul.f32 %v1598, 0.5
        %v1855 = vmul.f32 %v1599, 0.5
        %v1856 = vmul.f32 %v1600, 0.5
        %v1857 = vmul.f32 %v1601, 0.5
        %v1858 = vmul.f32 %v1602, 0.5
        %v1859 = vmul.f32 %v1603, 0.5
        %v1860 = vmul.f32 %v1604, 0.5
        %v1861 = vmul.f32 %v1605, 0.5
        %v1862 = vmul.f32 %v1606, 0.5
        %v1863 = vmul.f32 %v1607, 0.5
        %v1864 = vmul.f32 %v1608, 0.5
        %v1865 = vmul.f32 %v1609, 0.5
        %v1866 = vmul.f32 %v1610, 0.5
        %v1867 = vmul.f32 %v1611, 0.5
        %v1868 = vmul.f32 %v1612, 0.5
        %v1869 = vmul.f32 %v1613, 0.5
        %v1870 = vmul.f32 %v1614, 0.5
        %v1871 = vmul.f32 %v1615, 0.5
        %v1872 = vmul.f32 %v1616, 0.5
        %v1873 = vmul.f32 %v1617, 0.5
        %v1874 = vmul.f32 %v1618, 0.5
        %v1875 = vmul.f32 %v1619, 0.5
        %v1876 = vmul.f32 %v1620, 0.5
        %v1877 = vmul.f32 %v1621, 0.5
        %v1878 = vmul.f32 %v1622, 0.5
        %v1879 = vmul.f32 %v1623, 0.5
        %v1880 = vmul.f32 %v1624, 0.5
        %v1881 = vmul.f32 %v1625, 0.5
        %v1882 = vmul.f32 %v1626, 0.5
        %v1883 = vmul.f32 %v1627, 0.5
        %v1884 = vmul.f32 %v1628, 0.5
        %v1885 = vmul.f32 %v1629, 0.5
        %v1886 = vmul.f32 %v1630, 0.5
        %v1887 = vmul.f32 %v1631, 0.5
        %v1888 = vmul.f32 %v1632, 0.5
        %v1889 = vmul.f32 %v1633, 0.5
        %v1890 = vmul.f32 %v1634, 0.5
        %v1891 = vmul.f32 %v1635, 0.5
        %v1892 = vmul.f32 %v1636, 0.5
        %v1893 = vmul.f32 %v1637, 0.5
        %v1894 = vmul.f32 %v1638, 0.5
        %v1895 = vmul.f32 %v1639, 0.5
        %v1896 = vmul.f32 %v1640, 0.5
        %v1897 = vmul.f32 %v1641, 0.5
        %v1898 = vmul.f32 %v1642, 0.5
        %v1899 = vmul.f32 %v1643, 0.5
        %v1900 = vmul.f32 %v1644, 0.5
        %v1901 = vmul.f32 %v1645, 0.5
        %v1902 = vmul.f32 %v1646, 0.5
        %v1903 = vmul.f32 %v1647, 0.5
        %v1904 = vmul.f32 %v1648, 0.5
        %v1905 = vmul.f32 %v1649, 0.5
        %v1906 = vmul.f32 %v1650, 0.5
        %v1907 = vmul.f32 %v1651, 0.5
        %v1908 = vmul.f32 %v1652, 0.5
        %v1909 = vmul.f32 %v1653, 0.5
        %v1910 = vmul.f32 %v1654, 0.5
        %v1911 = vmul.f32 %v1655, 0.5
        %v1912 = vmul.f32 %v1656, 0.5
        %v1913 = vmul.f32 %v1657, 0.5
        %v1914 = vmul.f32 %v1658, 0.5
        %v1915 = vmul.f32 %v1659, 0.5
        %v1916 = vmul.f32 %v1660, 0.5
        %v1917 = vmul.f32 %v1661, 0.5
        %v1918 = vmul.f32 %v1662, 0.5
        %v1919 = vmul.f32 %v1663, 0.5
        %v1920 = vmul.f32 %v1664, 0.5
        %v1921 = vmul.f32 %v1665, 0.5
        %v1922 = vmul.f32 %v1666, 0.5
        %v1923 = vmul.f32 %v1667, 0.5
        %v1924 = vmul.f32 %v1668, 0.5
        %v1925 = vmul.f32 %v1669, 0.5
        %v1926 = vmul.f32 %v1670, 0.5
        %v1927 = vmul.f32 %v1671, 0.5
        %v1928 = vmul.f32 %v1672, 0.5
        %v1929 = vmul.f32 %v1673, 0.5
        %v1930 = vmul.f32 %v1674, 0.5
        %v1931 = vmul.f32 %v1675, 0.5
        %v1932 = vadd.f32 %v1676, 0.5
        %v1933 = vadd.f32 %v1677, 0.5
        %v1934 = vadd.f32 %v1678, 0.5
        %v1935 = vadd.f32 %v1679, 0.5
        %v1936 = vadd.f32 %v1680, 0.5
        %v1937 = vadd.f32 %v1681, 0.5
        %v1938 = vadd.f32 %v1682, 0.5
        %v1939 = vadd.f32 %v1683, 0.5
        %v1940 = vadd.f32 %v1684, 0.5
        %v1941 = vadd.f32 %v1685, 0.5
        %v1942 = vadd.f32 %v1686, 0.5
        %v1943 = vadd.f32 %v1687, 0.5
        %v1944 = vadd.f32 %v1688, 0.5
        %v1945 = vadd.f32 %v1689, 0.5
        %v1946 = vadd.f32 %v1690, 0.5
        %v1947 = vadd.f32 %v1691, 0.5
        %v1948 = vadd.f32 %v1692, 0.5
        %v1949 = vadd.f32 %v1693, 0.5
        %v1950 = vadd.f32 %v1694, 0.5
        %v1951 = vadd.f32 %v1695, 0.5
        %v1952 = vadd.f32 %v1696, 0.5
        %v1953 = vadd.f32 %v1697, 0.5
        %v1954 = vadd.f32 %v1698, 0.5
        %v1955 = vadd.f32 %v1699, 0.5
        %v1956 = vadd.f32 %v1700, 0.5
        %v1957 = vadd.f32 %v1701, 0.5
        %v1958 = vadd.f32 %v1702, 0.5
        %v1959 = vadd.f32 %v1703, 0.5
        %v1960 = vadd.f32 %v1704, 0.5
        %v1961 = vadd.f32 %v1705, 0.5
        %v1962 = vadd.f32 %v1706, 0.5
        %v1963 = vadd.f32 %v1707, 0.5
        %v1964 = vadd.f32 %v1708, 0.5
        %v1965 = vadd.f32 %v1709, 0.5
        %v1966 = vadd.f32 %v1710, 0.5
        %v1967 = vadd.f32 %v1711, 0.5
        %v1968 = vadd.f32 %v1712, 0.5
        %v1969 = vadd.f32 %v1713, 0.5
        %v1970 = vadd.f32 %v1714, 0.5
        %v1971 = vadd.f32 %v1715, 0.5
        %v1972 = vadd.f32 %v1716, 0.5
        %v1973 = vadd.f32 %v1717, 0.5
        %v1974 = vadd.f32 %v1718, 0.5
        %v1975 = vadd.f32 %v1719, 0.5
        %v1976 = vadd.f32 %v1720, 0.5
        %v1977 = vadd.f32 %v1721, 0.5
        %v1978 = vadd.f32 %v1722, 0.5
        %v1979 = vadd.f32 %v1723, 0.5
        %v1980 = vadd.f32 %v1724, 0.5
        %v1981 = vadd.f32 %v1725, 0.5
        %v1982 = vadd.f32 %v1726, 0.5
        %v1983 = vadd.f32 %v1727, 0.5
        %v1984 = vadd.f32 %v1728, 0.5
        %v1985 = vadd.f32 %v1729, 0.5
        %v1986 = vadd.f32 %v1730, 0.5
        %v1987 = vadd.f32 %v1731, 0.5
        %v1988 = vadd.f32 %v1732, 0.5
        %v1989 = vadd.f32 %v1733, 0.5
        %v1990 = vadd.f32 %v1734, 0.5
        %v1991 = vadd.f32 %v1735, 0.5
        %v1992 = vadd.f32 %v1736, 0.5
        %v1993 = vadd.f32 %v1737, 0.5
        %v1994 = vadd.f32 %v1738, 0.5
        %v1995 = vadd.f32 %v1739, 0.5
        %v1996 = vadd.f32 %v1740, 0.5
        %v1997 = vadd.f32 %v1741, 0.5
        %v1998 = vadd.f32 %v1742, 0.5
        %v1999 = vadd.f32 %v1743, 0.5
        %v2000 = vadd.f32 %v1744, 0.5
        %v2001 = vadd.f32 %v1745, 0.5
        %v2002 = vadd.f32 %v1746, 0.5
        %v2003 = vadd.f32 %v1747, 0.5
        %v2004 = vadd.f32 %v1748, 0.5
        %v2005 = vadd.f32 %v1749, 0.5
        %v2006 = vadd.f32 %v1750, 0.5
        %v2007 = vadd.f32 %v1751, 0.5
        %v2008 = vadd.f32 %v1752, 0.5
        %v2009 = vadd.f32 %v1753, 0.5
        %v2010 = vadd.f32 %v1754, 0.5
        %v2011 = vadd.f32 %v1755, 0.5
        %v2012 = vadd.f32 %v1756, 0.5
        %v2013 = vadd.f32 %v1757, 0.5
        %v2014 = vadd.f32 %v1758, 0.5
        %v2015 = vadd.f32 %v1759, 0.5
        %v2016 = vadd.f32 %v1760, 0.5
        %v2017 = vadd.f32 %v1761, 0.5
        %v2018 = vadd.f32 %v1762, 0.5
        %v2019 = vadd.f32 %v1763, 0.5
        %v2020 = vadd.f32 %v1764, 0.5
        %v2021 = vadd.f32 %v1765, 0.5
        %v2022 = vadd.f32 %v1766, 0.5
        %v2023 = vadd.f32 %v1767, 0.5
        %v2024 = vadd.f32 %v1768, 0.5
        %v2025 = vadd.f32 %v1769, 0.5
        %v2026 = vadd.f32 %v1770, 0.5
        %v2027 = vadd.f32 %v1771, 0.5
        %v2028 = vadd.f32 %v1772, 0.5
        %v2029 = vadd.f32 %v1773, 0.5
        %v2030 = vadd.f32 %v1774, 0.5
        %v2031 = vadd.f32 %v1775, 0.5
        %v2032 = vadd.f32 %v1776, 0.5
        %v2033 = vadd.f32 %v1777, 0.5
        %v2034 = vadd.f32 %v1778, 0.5
        %v2035 = vadd.f32 %v1779, 0.5
        %v2036 = vadd.f32 %v1780, 0.5
        %v2037 = vadd.f32 %v1781, 0.5
        %v2038 = vadd.f32 %v1782, 0.5
        %v2039 = vadd.f32 %v1783, 0.5
        %v2040 = vadd.f32 %v1784, 0.5
        %v2041 = vadd.f32 %v1785, 0.5
        %v2042 = vadd.f32 %v1786, 0.5
        %v2043 = vadd.f32 %v1787, 0.5
        %v2044 = vadd.f32 %v1788, 0.5
        %v2045 = vadd.f32 %v1789, 0.5
        %v2046 = vadd.f32 %v1790, 0.5
        %v2047 = vadd.f32 %v1791, 0.5
        %v2048 = vadd.f32 %v1792, 0.5
        %v2049 = vadd.f32 %v1793, 0.5
        %v2050 = vadd.f32 %v1794, 0.5
        %v2051 = vadd.f32 %v1795, 0.5
        %v2052 = vadd.f32 %v1796, 0.5
        %v2053 = vadd.f32 %v1797, 0.5
        %v2054 = vadd.f32 %v1798, 0.5
        %v2055 = vadd.f32 %v1799, 0.5
        %v2056 = vadd.f32 %v1800, 0.5
        %v2057 = vadd.f32 %v1801, 0.5
        %v2058 = vadd.f32 %v1802, 0.5
        %v2059 = vadd.f32 %v1803, 0.5
        %v2060 = vadd.f32 %v1804, 0.5
        %v2061 = vadd.f32 %v1805, 0.5
        %v2062 = vadd.f32 %v1806, 0.5
        %v2063 = vadd.f32 %v1807, 0.5
        %v2064 = vadd.f32 %v1808, 0.5
        %v2065 = vadd.f32 %v1809, 0.5
        %v2066 = vadd.f32 %v1810, 0.5
        %v2067 = vadd.f32 %v1811, 0.5
        %v2068 = vadd.f32 %v1812, 0.5
        %v2069 = vadd.f32 %v1813, 0.5
        %v2070 = vadd.f32 %v1814, 0.5
        %v2071 = vadd.f32 %v1815, 0.5
        %v2072 = vadd.f32 %v1816, 0.5
        %v2073 = vadd.f32 %v1817, 0.5
        %v2074 = vadd.f32 %v1818, 0.5
        %v2075 = vadd.f32 %v1819, 0.5
        %v2076 = vadd.f32 %v1820, 0.5
        %v2077 = vadd.f32 %v1821, 0.5
        %v2078 = vadd.f32 %v1822, 0.5
        %v2079 = vadd.f32 %v1823, 0.5
        %v2080 = vadd.f32 %v1824, 0.5
        %v2081 = vadd.f32 %v1825, 0.5
        %v2082 = vadd.f32 %v1826, 0.5
        %v2083 = vadd.f32 %v1827, 0.5
        %v2084 = vadd.f32 %v1828, 0.5
        %v2085 = vadd.f32 %v1829, 0.5
        %v2086 = vadd.f32 %v1830, 0.5
        %v2087 = vadd.f32 %v1831, 0.5
        %v2088 = vadd.f32 %v1832, 0.5
        %v2089 = vadd.f32 %v1833, 0.5
        %v2090 = vadd.f32 %v1834, 0.5
        %v2091 = vadd.f32 %v1835, 0.5
        %v2092 = vadd.f32 %v1836, 0.5
        %v2093 = vadd.f32 %v1837, 0.5
        %v2094 = vadd.f32 %v1838, 0.5
        %v2095 = vadd.f32 %v1839, 0.5
        %v2096 = vadd.f32 %v1840, 0.5
        %v2097 = vadd.f32 %v1841, 0.5
        %v2098 = vadd.f32 %v1842, 0.5
        %v2099 = vadd.f32 %v1843, 0.5
        %v2100 = vadd.f32 %v1844, 0.5
        %v2101 = vadd.f32 %v1845, 0.5
        %v2102 = vadd.f32 %v1846, 0.5
        %v2103 = vadd.f32 %v1847, 0.5
        %v2104 = vadd.f32 %v1848, 0.5
        %v2105 = vadd.f32 %v1849, 0.5
        %v2106 = vadd.f32 %v1850, 0.5
        %v2107 = vadd.f32 %v1851, 0.5
        %v2108 = vadd.f32 %v1852, 0.5
        %v2109 = vadd.f32 %v1853, 0.5
        %v2110 = vadd.f32 %v1854, 0.5
        %v2111 = vadd.f32 %v1855, 0.5
        %v2112 = vadd.f32 %v1856, 0.5
        %v2113 = vadd.f32 %v1857, 0.5
        %v2114 = vadd.f32 %v1858, 0.5
        %v2115 = vadd.f32 %v1859, 0.5
        %v2116 = vadd.f32 %v1860, 0.5
        %v2117 = vadd.f32 %v1861, 0.5
        %v2118 = vadd.f32 %v1862, 0.5
        %v2119 = vadd.f32 %v1863, 0.5
        %v2120 = vadd.f32 %v1864, 0.5
        %v2121 = vadd.f32 %v1865, 0.5
        %v2122 = vadd.f32 %v1866, 0.5
        %v2123 = vadd.f32 %v1867, 0.5
        %v2124 = vadd.f32 %v1868, 0.5
        %v2125 = vadd.f32 %v1869, 0.5
        %v2126 = vadd.f32 %v1870, 0.5
        %v2127 = vadd.f32 %v1871, 0.5
        %v2128 = vadd.f32 %v1872, 0.5
        %v2129 = vadd.f32 %v1873, 0.5
        %v2130 = vadd.f32 %v1874, 0.5
        %v2131 = vadd.f32 %v1875, 0.5
        %v2132 = vadd.f32 %v1876, 0.5
        %v2133 = vadd.f32 %v1877, 0.5
        %v2134 = vadd.f32 %v1878, 0.5
        %v2135 = vadd.f32 %v1879, 0.5
        %v2136 = vadd.f32 %v1880, 0.5
        %v2137 = vadd.f32 %v1881, 0.5
        %v2138 = vadd.f32 %v1882, 0.5
        %v2139 = vadd.f32 %v1883, 0.5
        %v2140 = vadd.f32 %v1884, 0.5
        %v2141 = vadd.f32 %v1885, 0.5
        %v2142 = vadd.f32 %v1886, 0.5
        %v2143 = vadd.f32 %v1887, 0.5
        %v2144 = vadd.f32 %v1888, 0.5
        %v2145 = vadd.f32 %v1889, 0.5
        %v2146 = vadd.f32 %v1890, 0.5
        %v2147 = vadd.f32 %v1891, 0.5
        %v2148 = vadd.f32 %v1892, 0.5
        %v2149 = vadd.f32 %v1893, 0.5
        %v2150 = vadd.f32 %v1894, 0.5
        %v2151 = vadd.f32 %v1895, 0.5
        %v2152 = vadd.f32 %v1896, 0.5
        %v2153 = vadd.f32 %v1897, 0.5
        %v2154 = vadd.f32 %v1898, 0.5
        %v2155 = vadd.f32 %v1899, 0.5
        %v2156 = vadd.f32 %v1900, 0.5
        %v2157 = vadd.f32 %v1901, 0.5
        %v2158 = vadd.f32 %v1902, 0.5
        %v2159 = vadd.f32 %v1903, 0.5
        %v2160 = vadd.f32 %v1904, 0.5
        %v2161 = vadd.f32 %v1905, 0.5
        %v2162 = vadd.f32 %v1906, 0.5
        %v2163 = vadd.f32 %v1907, 0.5
        %v2164 = vadd.f32 %v1908, 0.5
        %v2165 = vadd.f32 %v1909, 0.5
        %v2166 = vadd.f32 %v1910, 0.5
        %v2167 = vadd.f32 %v1911, 0.5
        %v2168 = vadd.f32 %v1912, 0.5
        %v2169 = vadd.f32 %v1913, 0.5
        %v2170 = vadd.f32 %v1914, 0.5
        %v2171 = vadd.f32 %v1915, 0.5
        %v2172 = vadd.f32 %v1916, 0.5
        %v2173 = vadd.f32 %v1917, 0.5
        %v2174 = vadd.f32 %v1918, 0.5
        %v2175 = vadd.f32 %v1919, 0.5
        %v2176 = vadd.f32 %v1920, 0.5
        %v2177 = vadd.f32 %v1921, 0.5
        %v2178 = vadd.f32 %v1922, 0.5
        %v2179 = vadd.f32 %v1923, 0.5
        %v2180 = vadd.f32 %v1924, 0.5
        %v2181 = vadd.f32 %v1925, 0.5
        %v2182 = vadd.f32 %v1926, 0.5
        %v2183 = vadd.f32 %v1927, 0.5
        %v2184 = vadd.f32 %v1928, 0.5
        %v2185 = vadd.f32 %v1929, 0.5
        %v2186 = vadd.f32 %v1930, 0.5
        %v2187 = vadd.f32 %v1931, 0.5
        %v2188 = vmul.f32 %v140, %v1932
        %v2189 = vmul.f32 %v141, %v1933
        %v2190 = vmul.f32 %v142, %v1934
        %v2191 = vmul.f32 %v143, %v1935
        %v2192 = vmul.f32 %v144, %v1936
        %v2193 = vmul.f32 %v145, %v1937
        %v2194 = vmul.f32 %v146, %v1938
        %v2195 = vmul.f32 %v147, %v1939
        %v2196 = vmul.f32 %v148, %v1940
        %v2197 = vmul.f32 %v149, %v1941
        %v2198 = vmul.f32 %v150, %v1942
        %v2199 = vmul.f32 %v151, %v1943
        %v2200 = vmul.f32 %v152, %v1944
        %v2201 = vmul.f32 %v153, %v1945
        %v2202 = vmul.f32 %v154, %v1946
        %v2203 = vmul.f32 %v155, %v1947
        %v2204 = vmul.f32 %v156, %v1948
        %v2205 = vmul.f32 %v157, %v1949
        %v2206 = vmul.f32 %v158, %v1950
        %v2207 = vmul.f32 %v159, %v1951
        %v2208 = vmul.f32 %v160, %v1952
        %v2209 = vmul.f32 %v161, %v1953
        %v2210 = vmul.f32 %v162, %v1954
        %v2211 = vmul.f32 %v163, %v1955
        %v2212 = vmul.f32 %v164, %v1956
        %v2213 = vmul.f32 %v165, %v1957
        %v2214 = vmul.f32 %v166, %v1958
        %v2215 = vmul.f32 %v167, %v1959
        %v2216 = vmul.f32 %v168, %v1960
        %v2217 = vmul.f32 %v169, %v1961
        %v2218 = vmul.f32 %v170, %v1962
        %v2219 = vmul.f32 %v171, %v1963
        %v2220 = vmul.f32 %v172, %v1964
        %v2221 = vmul.f32 %v173, %v1965
        %v2222 = vmul.f32 %v174, %v1966
        %v2223 = vmul.f32 %v175, %v1967
        %v2224 = vmul.f32 %v176, %v1968
        %v2225 = vmul.f32 %v177, %v1969
        %v2226 = vmul.f32 %v178, %v1970
        %v2227 = vmul.f32 %v179, %v1971
        %v2228 = vmul.f32 %v180, %v1972
        %v2229 = vmul.f32 %v181, %v1973
        %v2230 = vmul.f32 %v182, %v1974
        %v2231 = vmul.f32 %v183, %v1975
        %v2232 = vmul.f32 %v184, %v1976
        %v2233 = vmul.f32 %v185, %v1977
        %v2234 = vmul.f32 %v186, %v1978
        %v2235 = vmul.f32 %v187, %v1979
        %v2236 = vmul.f32 %v188, %v1980
        %v2237 = vmul.f32 %v189, %v1981
        %v2238 = vmul.f32 %v190, %v1982
        %v2239 = vmul.f32 %v191, %v1983
        %v2240 = vmul.f32 %v192, %v1984
        %v2241 = vmul.f32 %v193, %v1985
        %v2242 = vmul.f32 %v194, %v1986
        %v2243 = vmul.f32 %v195, %v1987
        %v2244 = vmul.f32 %v196, %v1988
        %v2245 = vmul.f32 %v197, %v1989
        %v2246 = vmul.f32 %v198, %v1990
        %v2247 = vmul.f32 %v199, %v1991
        %v2248 = vmul.f32 %v200, %v1992
        %v2249 = vmul.f32 %v201, %v1993
        %v2250 = vmul.f32 %v202, %v1994
        %v2251 = vmul.f32 %v203, %v1995
        %v2252 = vmul.f32 %v204, %v1996
        %v2253 = vmul.f32 %v205, %v1997
        %v2254 = vmul.f32 %v206, %v1998
        %v2255 = vmul.f32 %v207, %v1999
        %v2256 = vmul.f32 %v208, %v2000
        %v2257 = vmul.f32 %v209, %v2001
        %v2258 = vmul.f32 %v210, %v2002
        %v2259 = vmul.f32 %v211, %v2003
        %v2260 = vmul.f32 %v212, %v2004
        %v2261 = vmul.f32 %v213, %v2005
        %v2262 = vmul.f32 %v214, %v2006
        %v2263 = vmul.f32 %v215, %v2007
        %v2264 = vmul.f32 %v216, %v2008
        %v2265 = vmul.f32 %v217, %v2009
        %v2266 = vmul.f32 %v218, %v2010
        %v2267 = vmul.f32 %v219, %v2011
        %v2268 = vmul.f32 %v220, %v2012
        %v2269 = vmul.f32 %v221, %v2013
        %v2270 = vmul.f32 %v222, %v2014
        %v2271 = vmul.f32 %v223, %v2015
        %v2272 = vmul.f32 %v224, %v2016
        %v2273 = vmul.f32 %v225, %v2017
        %v2274 = vmul.f32 %v226, %v2018
        %v2275 = vmul.f32 %v227, %v2019
        %v2276 = vmul.f32 %v228, %v2020
        %v2277 = vmul.f32 %v229, %v2021
        %v2278 = vmul.f32 %v230, %v2022
        %v2279 = vmul.f32 %v231, %v2023
        %v2280 = vmul.f32 %v232, %v2024
        %v2281 = vmul.f32 %v233, %v2025
        %v2282 = vmul.f32 %v234, %v2026
        %v2283 = vmul.f32 %v235, %v2027
        %v2284 = vmul.f32 %v236, %v2028
        %v2285 = vmul.f32 %v237, %v2029
        %v2286 = vmul.f32 %v238, %v2030
        %v2287 = vmul.f32 %v239, %v2031
        %v2288 = vmul.f32 %v240, %v2032
        %v2289 = vmul.f32 %v241, %v2033
        %v2290 = vmul.f32 %v242, %v2034
        %v2291 = vmul.f32 %v243, %v2035
        %v2292 = vmul.f32 %v244, %v2036
        %v2293 = vmul.f32 %v245, %v2037
        %v2294 = vmul.f32 %v246, %v2038
        %v2295 = vmul.f32 %v247, %v2039
        %v2296 = vmul.f32 %v248, %v2040
        %v2297 = vmul.f32 %v249, %v2041
        %v2298 = vmul.f32 %v250, %v2042
        %v2299 = vmul.f32 %v251, %v2043
        %v2300 = vmul.f32 %v252, %v2044
        %v2301 = vmul.f32 %v253, %v2045
        %v2302 = vmul.f32 %v254, %v2046
        %v2303 = vmul.f32 %v255, %v2047
        %v2304 = vmul.f32 %v256, %v2048
        %v2305 = vmul.f32 %v257, %v2049
        %v2306 = vmul.f32 %v258, %v2050
        %v2307 = vmul.f32 %v259, %v2051
        %v2308 = vmul.f32 %v260, %v2052
        %v2309 = vmul.f32 %v261, %v2053
        %v2310 = vmul.f32 %v262, %v2054
        %v2311 = vmul.f32 %v263, %v2055
        %v2312 = vmul.f32 %v264, %v2056
        %v2313 = vmul.f32 %v265, %v2057
        %v2314 = vmul.f32 %v266, %v2058
        %v2315 = vmul.f32 %v267, %v2059
        %v2316 = vmul.f32 %v268, %v2060
        %v2317 = vmul.f32 %v269, %v2061
        %v2318 = vmul.f32 %v270, %v2062
        %v2319 = vmul.f32 %v271, %v2063
        %v2320 = vmul.f32 %v272, %v2064
        %v2321 = vmul.f32 %v273, %v2065
        %v2322 = vmul.f32 %v274, %v2066
        %v2323 = vmul.f32 %v275, %v2067
        %v2324 = vmul.f32 %v276, %v2068
        %v2325 = vmul.f32 %v277, %v2069
        %v2326 = vmul.f32 %v278, %v2070
        %v2327 = vmul.f32 %v279, %v2071
        %v2328 = vmul.f32 %v280, %v2072
        %v2329 = vmul.f32 %v281, %v2073
        %v2330 = vmul.f32 %v282, %v2074
        %v2331 = vmul.f32 %v283, %v2075
        %v2332 = vmul.f32 %v284, %v2076
        %v2333 = vmul.f32 %v285, %v2077
        %v2334 = vmul.f32 %v286, %v2078
        %v2335 = vmul.f32 %v287, %v2079
        %v2336 = vmul.f32 %v288, %v2080
        %v2337 = vmul.f32 %v289, %v2081
        %v2338 = vmul.f32 %v290, %v2082
        %v2339 = vmul.f32 %v291, %v2083
        %v2340 = vmul.f32 %v292, %v2084
        %v2341 = vmul.f32 %v293, %v2085
        %v2342 = vmul.f32 %v294, %v2086
        %v2343 = vmul.f32 %v295, %v2087
        %v2344 = vmul.f32 %v296, %v2088
        %v2345 = vmul.f32 %v297, %v2089
        %v2346 = vmul.f32 %v298, %v2090
        %v2347 = vmul.f32 %v299, %v2091
        %v2348 = vmul.f32 %v300, %v2092
        %v2349 = vmul.f32 %v301, %v2093
        %v2350 = vmul.f32 %v302, %v2094
        %v2351 = vmul.f32 %v303, %v2095
        %v2352 = vmul.f32 %v304, %v2096
        %v2353 = vmul.f32 %v305, %v2097
        %v2354 = vmul.f32 %v306, %v2098
        %v2355 = vmul.f32 %v307, %v2099
        %v2356 = vmul.f32 %v308, %v2100
        %v2357 = vmul.f32 %v309, %v2101
        %v2358 = vmul.f32 %v310, %v2102
        %v2359 = vmul.f32 %v311, %v2103
        %v2360 = vmul.f32 %v312, %v2104
        %v2361 = vmul.f32 %v313, %v2105
        %v2362 = vmul.f32 %v314, %v2106
        %v2363 = vmul.f32 %v315, %v2107
        %v2364 = vmul.f32 %v316, %v2108
        %v2365 = vmul.f32 %v317, %v2109
        %v2366 = vmul.f32 %v318, %v2110
        %v2367 = vmul.f32 %v319, %v2111
        %v2368 = vmul.f32 %v320, %v2112
        %v2369 = vmul.f32 %v321, %v2113
        %v2370 = vmul.f32 %v322, %v2114
        %v2371 = vmul.f32 %v323, %v2115
        %v2372 = vmul.f32 %v324, %v2116
        %v2373 = vmul.f32 %v325, %v2117
        %v2374 = vmul.f32 %v326, %v2118
        %v2375 = vmul.f32 %v327, %v2119
        %v2376 = vmul.f32 %v328, %v2120
        %v2377 = vmul.f32 %v329, %v2121
        %v2378 = vmul.f32 %v330, %v2122
        %v2379 = vmul.f32 %v331, %v2123
        %v2380 = vmul.f32 %v332, %v2124
        %v2381 = vmul.f32 %v333, %v2125
        %v2382 = vmul.f32 %v334, %v2126
        %v2383 = vmul.f32 %v335, %v2127
        %v2384 = vmul.f32 %v336, %v2128
        %v2385 = vmul.f32 %v337, %v2129
        %v2386 = vmul.f32 %v338, %v2130
        %v2387 = vmul.f32 %v339, %v2131
        %v2388 = vmul.f32 %v340, %v2132
        %v2389 = vmul.f32 %v341, %v2133
        %v2390 = vmul.f32 %v342, %v2134
        %v2391 = vmul.f32 %v343, %v2135
        %v2392 = vmul.f32 %v344, %v2136
        %v2393 = vmul.f32 %v345, %v2137
        %v2394 = vmul.f32 %v346, %v2138
        %v2395 = vmul.f32 %v347, %v2139
        %v2396 = vmul.f32 %v348, %v2140
        %v2397 = vmul.f32 %v349, %v2141
        %v2398 = vmul.f32 %v350, %v2142
        %v2399 = vmul.f32 %v351, %v2143
        %v2400 = vmul.f32 %v352, %v2144
        %v2401 = vmul.f32 %v353, %v2145
        %v2402 = vmul.f32 %v354, %v2146
        %v2403 = vmul.f32 %v355, %v2147
        %v2404 = vmul.f32 %v356, %v2148
        %v2405 = vmul.f32 %v357, %v2149
        %v2406 = vmul.f32 %v358, %v2150
        %v2407 = vmul.f32 %v359, %v2151
        %v2408 = vmul.f32 %v360, %v2152
        %v2409 = vmul.f32 %v361, %v2153
        %v2410 = vmul.f32 %v362, %v2154
        %v2411 = vmul.f32 %v363, %v2155
        %v2412 = vmul.f32 %v364, %v2156
        %v2413 = vmul.f32 %v365, %v2157
        %v2414 = vmul.f32 %v366, %v2158
        %v2415 = vmul.f32 %v367, %v2159
        %v2416 = vmul.f32 %v368, %v2160
        %v2417 = vmul.f32 %v369, %v2161
        %v2418 = vmul.f32 %v370, %v2162
        %v2419 = vmul.f32 %v371, %v2163
        %v2420 = vmul.f32 %v372, %v2164
        %v2421 = vmul.f32 %v373, %v2165
        %v2422 = vmul.f32 %v374, %v2166
        %v2423 = vmul.f32 %v375, %v2167
        %v2424 = vmul.f32 %v376, %v2168
        %v2425 = vmul.f32 %v377, %v2169
        %v2426 = vmul.f32 %v378, %v2170
        %v2427 = vmul.f32 %v379, %v2171
        %v2428 = vmul.f32 %v380, %v2172
        %v2429 = vmul.f32 %v381, %v2173
        %v2430 = vmul.f32 %v382, %v2174
        %v2431 = vmul.f32 %v383, %v2175
        %v2432 = vmul.f32 %v384, %v2176
        %v2433 = vmul.f32 %v385, %v2177
        %v2434 = vmul.f32 %v386, %v2178
        %v2435 = vmul.f32 %v387, %v2179
        %v2436 = vmul.f32 %v388, %v2180
        %v2437 = vmul.f32 %v389, %v2181
        %v2438 = vmul.f32 %v390, %v2182
        %v2439 = vmul.f32 %v391, %v2183
        %v2440 = vmul.f32 %v392, %v2184
        %v2441 = vmul.f32 %v393, %v2185
        %v2442 = vmul.f32 %v394, %v2186
        %v2443 = vmul.f32 %v395, %v2187
        %2444 = vst [vmem:[%s137] sm:$0xff] %v2188
        %2445 = vst [vmem:[%s137 + $0x8] sm:$0xff] %v2189
        %2446 = vst [vmem:[%s137 + $0x10] sm:$0xff] %v2190
        %2447 = vst [vmem:[%s137 + $0x18] sm:$0xff] %v2191
        %2448 = vst [vmem:[%s137 + $0x20] sm:$0xff] %v2192
        %2449 = vst [vmem:[%s137 + $0x28] sm:$0xff] %v2193
        %2450 = vst [vmem:[%s137 + $0x30] sm:$0xff] %v2194
        %2451 = vst [vmem:[%s137 + $0x38] sm:$0xff] %v2195
        %2452 = vst [vmem:[%s137 + $0x40] sm:$0xff] %v2196
        %2453 = vst [vmem:[%s137 + $0x48] sm:$0xff] %v2197
        %2454 = vst [vmem:[%s137 + $0x50] sm:$0xff] %v2198
        %2455 = vst [vmem:[%s137 + $0x58] sm:$0xff] %v2199
        %2456 = vst [vmem:[%s137 + $0x60] sm:$0xff] %v2200
        %2457 = vst [vmem:[%s137 + $0x68] sm:$0xff] %v2201
        %2458 = vst [vmem:[%s137 + $0x70] sm:$0xff] %v2202
        %2459 = vst [vmem:[%s137 + $0x78] sm:$0xff] %v2203
        %2460 = vst [vmem:[%s137 + $0x80] sm:$0xff] %v2204
        %2461 = vst [vmem:[%s137 + $0x88] sm:$0xff] %v2205
        %2462 = vst [vmem:[%s137 + $0x90] sm:$0xff] %v2206
        %2463 = vst [vmem:[%s137 + $0x98] sm:$0xff] %v2207
        %2464 = vst [vmem:[%s137 + $0xa0] sm:$0xff] %v2208
        %2465 = vst [vmem:[%s137 + $0xa8] sm:$0xff] %v2209
        %2466 = vst [vmem:[%s137 + $0xb0] sm:$0xff] %v2210
        %2467 = vst [vmem:[%s137 + $0xb8] sm:$0xff] %v2211
        %2468 = vst [vmem:[%s137 + $0xc0] sm:$0xff] %v2212
        %2469 = vst [vmem:[%s137 + $0xc8] sm:$0xff] %v2213
        %2470 = vst [vmem:[%s137 + $0xd0] sm:$0xff] %v2214
        %2471 = vst [vmem:[%s137 + $0xd8] sm:$0xff] %v2215
        %2472 = vst [vmem:[%s137 + $0xe0] sm:$0xff] %v2216
        %2473 = vst [vmem:[%s137 + $0xe8] sm:$0xff] %v2217
        %2474 = vst [vmem:[%s137 + $0xf0] sm:$0xff] %v2218
        %2475 = vst [vmem:[%s137 + $0xf8] sm:$0xff] %v2219
        %2476 = vst [vmem:[%s137 + $0x100] sm:$0xff] %v2220
        %2477 = vst [vmem:[%s137 + $0x108] sm:$0xff] %v2221
        %2478 = vst [vmem:[%s137 + $0x110] sm:$0xff] %v2222
        %2479 = vst [vmem:[%s137 + $0x118] sm:$0xff] %v2223
        %2480 = vst [vmem:[%s137 + $0x120] sm:$0xff] %v2224
        %2481 = vst [vmem:[%s137 + $0x128] sm:$0xff] %v2225
        %2482 = vst [vmem:[%s137 + $0x130] sm:$0xff] %v2226
        %2483 = vst [vmem:[%s137 + $0x138] sm:$0xff] %v2227
        %2484 = vst [vmem:[%s137 + $0x140] sm:$0xff] %v2228
        %2485 = vst [vmem:[%s137 + $0x148] sm:$0xff] %v2229
        %2486 = vst [vmem:[%s137 + $0x150] sm:$0xff] %v2230
        %2487 = vst [vmem:[%s137 + $0x158] sm:$0xff] %v2231
        %2488 = vst [vmem:[%s137 + $0x160] sm:$0xff] %v2232
        %2489 = vst [vmem:[%s137 + $0x168] sm:$0xff] %v2233
        %2490 = vst [vmem:[%s137 + $0x170] sm:$0xff] %v2234
        %2491 = vst [vmem:[%s137 + $0x178] sm:$0xff] %v2235
        %2492 = vst [vmem:[%s137 + $0x180] sm:$0xff] %v2236
        %2493 = vst [vmem:[%s137 + $0x188] sm:$0xff] %v2237
        %2494 = vst [vmem:[%s137 + $0x190] sm:$0xff] %v2238
        %2495 = vst [vmem:[%s137 + $0x198] sm:$0xff] %v2239
        %2496 = vst [vmem:[%s137 + $0x1a0] sm:$0xff] %v2240
        %2497 = vst [vmem:[%s137 + $0x1a8] sm:$0xff] %v2241
        %2498 = vst [vmem:[%s137 + $0x1b0] sm:$0xff] %v2242
        %2499 = vst [vmem:[%s137 + $0x1b8] sm:$0xff] %v2243
        %2500 = vst [vmem:[%s137 + $0x1c0] sm:$0xff] %v2244
        %2501 = vst [vmem:[%s137 + $0x1c8] sm:$0xff] %v2245
        %2502 = vst [vmem:[%s137 + $0x1d0] sm:$0xff] %v2246
        %2503 = vst [vmem:[%s137 + $0x1d8] sm:$0xff] %v2247
        %2504 = vst [vmem:[%s137 + $0x1e0] sm:$0xff] %v2248
        %2505 = vst [vmem:[%s137 + $0x1e8] sm:$0xff] %v2249
        %2506 = vst [vmem:[%s137 + $0x1f0] sm:$0xff] %v2250
        %2507 = vst [vmem:[%s137 + $0x1f8] sm:$0xff] %v2251
        %2508 = vst [vmem:[%s137 + $0x200] sm:$0xff] %v2252
        %2509 = vst [vmem:[%s137 + $0x208] sm:$0xff] %v2253
        %2510 = vst [vmem:[%s137 + $0x210] sm:$0xff] %v2254
        %2511 = vst [vmem:[%s137 + $0x218] sm:$0xff] %v2255
        %2512 = vst [vmem:[%s137 + $0x220] sm:$0xff] %v2256
        %2513 = vst [vmem:[%s137 + $0x228] sm:$0xff] %v2257
        %2514 = vst [vmem:[%s137 + $0x230] sm:$0xff] %v2258
        %2515 = vst [vmem:[%s137 + $0x238] sm:$0xff] %v2259
        %2516 = vst [vmem:[%s137 + $0x240] sm:$0xff] %v2260
        %2517 = vst [vmem:[%s137 + $0x248] sm:$0xff] %v2261
        %2518 = vst [vmem:[%s137 + $0x250] sm:$0xff] %v2262
        %2519 = vst [vmem:[%s137 + $0x258] sm:$0xff] %v2263
        %2520 = vst [vmem:[%s137 + $0x260] sm:$0xff] %v2264
        %2521 = vst [vmem:[%s137 + $0x268] sm:$0xff] %v2265
        %2522 = vst [vmem:[%s137 + $0x270] sm:$0xff] %v2266
        %2523 = vst [vmem:[%s137 + $0x278] sm:$0xff] %v2267
        %2524 = vst [vmem:[%s137 + $0x280] sm:$0xff] %v2268
        %2525 = vst [vmem:[%s137 + $0x288] sm:$0xff] %v2269
        %2526 = vst [vmem:[%s137 + $0x290] sm:$0xff] %v2270
        %2527 = vst [vmem:[%s137 + $0x298] sm:$0xff] %v2271
        %2528 = vst [vmem:[%s137 + $0x2a0] sm:$0xff] %v2272
        %2529 = vst [vmem:[%s137 + $0x2a8] sm:$0xff] %v2273
        %2530 = vst [vmem:[%s137 + $0x2b0] sm:$0xff] %v2274
        %2531 = vst [vmem:[%s137 + $0x2b8] sm:$0xff] %v2275
        %2532 = vst [vmem:[%s137 + $0x2c0] sm:$0xff] %v2276
        %2533 = vst [vmem:[%s137 + $0x2c8] sm:$0xff] %v2277
        %2534 = vst [vmem:[%s137 + $0x2d0] sm:$0xff] %v2278
        %2535 = vst [vmem:[%s137 + $0x2d8] sm:$0xff] %v2279
        %2536 = vst [vmem:[%s137 + $0x2e0] sm:$0xff] %v2280
        %2537 = vst [vmem:[%s137 + $0x2e8] sm:$0xff] %v2281
        %2538 = vst [vmem:[%s137 + $0x2f0] sm:$0xff] %v2282
        %2539 = vst [vmem:[%s137 + $0x2f8] sm:$0xff] %v2283
        %2540 = vst [vmem:[%s137 + $0x300] sm:$0xff] %v2284
        %2541 = vst [vmem:[%s137 + $0x308] sm:$0xff] %v2285
        %2542 = vst [vmem:[%s137 + $0x310] sm:$0xff] %v2286
        %2543 = vst [vmem:[%s137 + $0x318] sm:$0xff] %v2287
        %2544 = vst [vmem:[%s137 + $0x320] sm:$0xff] %v2288
        %2545 = vst [vmem:[%s137 + $0x328] sm:$0xff] %v2289
        %2546 = vst [vmem:[%s137 + $0x330] sm:$0xff] %v2290
        %2547 = vst [vmem:[%s137 + $0x338] sm:$0xff] %v2291
        %2548 = vst [vmem:[%s137 + $0x340] sm:$0xff] %v2292
        %2549 = vst [vmem:[%s137 + $0x348] sm:$0xff] %v2293
        %2550 = vst [vmem:[%s137 + $0x350] sm:$0xff] %v2294
        %2551 = vst [vmem:[%s137 + $0x358] sm:$0xff] %v2295
        %2552 = vst [vmem:[%s137 + $0x360] sm:$0xff] %v2296
        %2553 = vst [vmem:[%s137 + $0x368] sm:$0xff] %v2297
        %2554 = vst [vmem:[%s137 + $0x370] sm:$0xff] %v2298
        %2555 = vst [vmem:[%s137 + $0x378] sm:$0xff] %v2299
        %2556 = vst [vmem:[%s137 + $0x380] sm:$0xff] %v2300
        %2557 = vst [vmem:[%s137 + $0x388] sm:$0xff] %v2301
        %2558 = vst [vmem:[%s137 + $0x390] sm:$0xff] %v2302
        %2559 = vst [vmem:[%s137 + $0x398] sm:$0xff] %v2303
        %2560 = vst [vmem:[%s137 + $0x3a0] sm:$0xff] %v2304
        %2561 = vst [vmem:[%s137 + $0x3a8] sm:$0xff] %v2305
        %2562 = vst [vmem:[%s137 + $0x3b0] sm:$0xff] %v2306
        %2563 = vst [vmem:[%s137 + $0x3b8] sm:$0xff] %v2307
        %2564 = vst [vmem:[%s137 + $0x3c0] sm:$0xff] %v2308
        %2565 = vst [vmem:[%s137 + $0x3c8] sm:$0xff] %v2309
        %2566 = vst [vmem:[%s137 + $0x3d0] sm:$0xff] %v2310
        %2567 = vst [vmem:[%s137 + $0x3d8] sm:$0xff] %v2311
        %2568 = vst [vmem:[%s137 + $0x3e0] sm:$0xff] %v2312
        %2569 = vst [vmem:[%s137 + $0x3e8] sm:$0xff] %v2313
        %2570 = vst [vmem:[%s137 + $0x3f0] sm:$0xff] %v2314
        %2571 = vst [vmem:[%s137 + $0x3f8] sm:$0xff] %v2315
        %2572 = vst [vmem:[%s137 + $0x400] sm:$0xff] %v2316
        %2573 = vst [vmem:[%s137 + $0x408] sm:$0xff] %v2317
        %2574 = vst [vmem:[%s137 + $0x410] sm:$0xff] %v2318
        %2575 = vst [vmem:[%s137 + $0x418] sm:$0xff] %v2319
        %2576 = vst [vmem:[%s137 + $0x420] sm:$0xff] %v2320
        %2577 = vst [vmem:[%s137 + $0x428] sm:$0xff] %v2321
        %2578 = vst [vmem:[%s137 + $0x430] sm:$0xff] %v2322
        %2579 = vst [vmem:[%s137 + $0x438] sm:$0xff] %v2323
        %2580 = vst [vmem:[%s137 + $0x440] sm:$0xff] %v2324
        %2581 = vst [vmem:[%s137 + $0x448] sm:$0xff] %v2325
        %2582 = vst [vmem:[%s137 + $0x450] sm:$0xff] %v2326
        %2583 = vst [vmem:[%s137 + $0x458] sm:$0xff] %v2327
        %2584 = vst [vmem:[%s137 + $0x460] sm:$0xff] %v2328
        %2585 = vst [vmem:[%s137 + $0x468] sm:$0xff] %v2329
        %2586 = vst [vmem:[%s137 + $0x470] sm:$0xff] %v2330
        %2587 = vst [vmem:[%s137 + $0x478] sm:$0xff] %v2331
        %2588 = vst [vmem:[%s137 + $0x480] sm:$0xff] %v2332
        %2589 = vst [vmem:[%s137 + $0x488] sm:$0xff] %v2333
        %2590 = vst [vmem:[%s137 + $0x490] sm:$0xff] %v2334
        %2591 = vst [vmem:[%s137 + $0x498] sm:$0xff] %v2335
        %2592 = vst [vmem:[%s137 + $0x4a0] sm:$0xff] %v2336
        %2593 = vst [vmem:[%s137 + $0x4a8] sm:$0xff] %v2337
        %2594 = vst [vmem:[%s137 + $0x4b0] sm:$0xff] %v2338
        %2595 = vst [vmem:[%s137 + $0x4b8] sm:$0xff] %v2339
        %2596 = vst [vmem:[%s137 + $0x4c0] sm:$0xff] %v2340
        %2597 = vst [vmem:[%s137 + $0x4c8] sm:$0xff] %v2341
        %2598 = vst [vmem:[%s137 + $0x4d0] sm:$0xff] %v2342
        %2599 = vst [vmem:[%s137 + $0x4d8] sm:$0xff] %v2343
        %2600 = vst [vmem:[%s137 + $0x4e0] sm:$0xff] %v2344
        %2601 = vst [vmem:[%s137 + $0x4e8] sm:$0xff] %v2345
        %2602 = vst [vmem:[%s137 + $0x4f0] sm:$0xff] %v2346
        %2603 = vst [vmem:[%s137 + $0x4f8] sm:$0xff] %v2347
        %2604 = vst [vmem:[%s137 + $0x500] sm:$0xff] %v2348
        %2605 = vst [vmem:[%s137 + $0x508] sm:$0xff] %v2349
        %2606 = vst [vmem:[%s137 + $0x510] sm:$0xff] %v2350
        %2607 = vst [vmem:[%s137 + $0x518] sm:$0xff] %v2351
        %2608 = vst [vmem:[%s137 + $0x520] sm:$0xff] %v2352
        %2609 = vst [vmem:[%s137 + $0x528] sm:$0xff] %v2353
        %2610 = vst [vmem:[%s137 + $0x530] sm:$0xff] %v2354
        %2611 = vst [vmem:[%s137 + $0x538] sm:$0xff] %v2355
        %2612 = vst [vmem:[%s137 + $0x540] sm:$0xff] %v2356
        %2613 = vst [vmem:[%s137 + $0x548] sm:$0xff] %v2357
        %2614 = vst [vmem:[%s137 + $0x550] sm:$0xff] %v2358
        %2615 = vst [vmem:[%s137 + $0x558] sm:$0xff] %v2359
        %2616 = vst [vmem:[%s137 + $0x560] sm:$0xff] %v2360
        %2617 = vst [vmem:[%s137 + $0x568] sm:$0xff] %v2361
        %2618 = vst [vmem:[%s137 + $0x570] sm:$0xff] %v2362
        %2619 = vst [vmem:[%s137 + $0x578] sm:$0xff] %v2363
        %2620 = vst [vmem:[%s137 + $0x580] sm:$0xff] %v2364
        %2621 = vst [vmem:[%s137 + $0x588] sm:$0xff] %v2365
        %2622 = vst [vmem:[%s137 + $0x590] sm:$0xff] %v2366
        %2623 = vst [vmem:[%s137 + $0x598] sm:$0xff] %v2367
        %2624 = vst [vmem:[%s137 + $0x5a0] sm:$0xff] %v2368
        %2625 = vst [vmem:[%s137 + $0x5a8] sm:$0xff] %v2369
        %2626 = vst [vmem:[%s137 + $0x5b0] sm:$0xff] %v2370
        %2627 = vst [vmem:[%s137 + $0x5b8] sm:$0xff] %v2371
        %2628 = vst [vmem:[%s137 + $0x5c0] sm:$0xff] %v2372
        %2629 = vst [vmem:[%s137 + $0x5c8] sm:$0xff] %v2373
        %2630 = vst [vmem:[%s137 + $0x5d0] sm:$0xff] %v2374
        %2631 = vst [vmem:[%s137 + $0x5d8] sm:$0xff] %v2375
        %2632 = vst [vmem:[%s137 + $0x5e0] sm:$0xff] %v2376
        %2633 = vst [vmem:[%s137 + $0x5e8] sm:$0xff] %v2377
        %2634 = vst [vmem:[%s137 + $0x5f0] sm:$0xff] %v2378
        %2635 = vst [vmem:[%s137 + $0x5f8] sm:$0xff] %v2379
        %2636 = vst [vmem:[%s137 + $0x600] sm:$0xff] %v2380
        %2637 = vst [vmem:[%s137 + $0x608] sm:$0xff] %v2381
        %2638 = vst [vmem:[%s137 + $0x610] sm:$0xff] %v2382
        %2639 = vst [vmem:[%s137 + $0x618] sm:$0xff] %v2383
        %2640 = vst [vmem:[%s137 + $0x620] sm:$0xff] %v2384
        %2641 = vst [vmem:[%s137 + $0x628] sm:$0xff] %v2385
        %2642 = vst [vmem:[%s137 + $0x630] sm:$0xff] %v2386
        %2643 = vst [vmem:[%s137 + $0x638] sm:$0xff] %v2387
        %2644 = vst [vmem:[%s137 + $0x640] sm:$0xff] %v2388
        %2645 = vst [vmem:[%s137 + $0x648] sm:$0xff] %v2389
        %2646 = vst [vmem:[%s137 + $0x650] sm:$0xff] %v2390
        %2647 = vst [vmem:[%s137 + $0x658] sm:$0xff] %v2391
        %2648 = vst [vmem:[%s137 + $0x660] sm:$0xff] %v2392
        %2649 = vst [vmem:[%s137 + $0x668] sm:$0xff] %v2393
        %2650 = vst [vmem:[%s137 + $0x670] sm:$0xff] %v2394
        %2651 = vst [vmem:[%s137 + $0x678] sm:$0xff] %v2395
        %2652 = vst [vmem:[%s137 + $0x680] sm:$0xff] %v2396
        %2653 = vst [vmem:[%s137 + $0x688] sm:$0xff] %v2397
        %2654 = vst [vmem:[%s137 + $0x690] sm:$0xff] %v2398
        %2655 = vst [vmem:[%s137 + $0x698] sm:$0xff] %v2399
        %2656 = vst [vmem:[%s137 + $0x6a0] sm:$0xff] %v2400
        %2657 = vst [vmem:[%s137 + $0x6a8] sm:$0xff] %v2401
        %2658 = vst [vmem:[%s137 + $0x6b0] sm:$0xff] %v2402
        %2659 = vst [vmem:[%s137 + $0x6b8] sm:$0xff] %v2403
        %2660 = vst [vmem:[%s137 + $0x6c0] sm:$0xff] %v2404
        %2661 = vst [vmem:[%s137 + $0x6c8] sm:$0xff] %v2405
        %2662 = vst [vmem:[%s137 + $0x6d0] sm:$0xff] %v2406
        %2663 = vst [vmem:[%s137 + $0x6d8] sm:$0xff] %v2407
        %2664 = vst [vmem:[%s137 + $0x6e0] sm:$0xff] %v2408
        %2665 = vst [vmem:[%s137 + $0x6e8] sm:$0xff] %v2409
        %2666 = vst [vmem:[%s137 + $0x6f0] sm:$0xff] %v2410
        %2667 = vst [vmem:[%s137 + $0x6f8] sm:$0xff] %v2411
        %2668 = vst [vmem:[%s137 + $0x700] sm:$0xff] %v2412
        %2669 = vst [vmem:[%s137 + $0x708] sm:$0xff] %v2413
        %2670 = vst [vmem:[%s137 + $0x710] sm:$0xff] %v2414
        %2671 = vst [vmem:[%s137 + $0x718] sm:$0xff] %v2415
        %2672 = vst [vmem:[%s137 + $0x720] sm:$0xff] %v2416
        %2673 = vst [vmem:[%s137 + $0x728] sm:$0xff] %v2417
        %2674 = vst [vmem:[%s137 + $0x730] sm:$0xff] %v2418
        %2675 = vst [vmem:[%s137 + $0x738] sm:$0xff] %v2419
        %2676 = vst [vmem:[%s137 + $0x740] sm:$0xff] %v2420
        %2677 = vst [vmem:[%s137 + $0x748] sm:$0xff] %v2421
        %2678 = vst [vmem:[%s137 + $0x750] sm:$0xff] %v2422
        %2679 = vst [vmem:[%s137 + $0x758] sm:$0xff] %v2423
        %2680 = vst [vmem:[%s137 + $0x760] sm:$0xff] %v2424
        %2681 = vst [vmem:[%s137 + $0x768] sm:$0xff] %v2425
        %2682 = vst [vmem:[%s137 + $0x770] sm:$0xff] %v2426
        %2683 = vst [vmem:[%s137 + $0x778] sm:$0xff] %v2427
        %2684 = vst [vmem:[%s137 + $0x780] sm:$0xff] %v2428
        %2685 = vst [vmem:[%s137 + $0x788] sm:$0xff] %v2429
        %2686 = vst [vmem:[%s137 + $0x790] sm:$0xff] %v2430
        %2687 = vst [vmem:[%s137 + $0x798] sm:$0xff] %v2431
        %2688 = vst [vmem:[%s137 + $0x7a0] sm:$0xff] %v2432
        %2689 = vst [vmem:[%s137 + $0x7a8] sm:$0xff] %v2433
        %2690 = vst [vmem:[%s137 + $0x7b0] sm:$0xff] %v2434
        %2691 = vst [vmem:[%s137 + $0x7b8] sm:$0xff] %v2435
        %2692 = vst [vmem:[%s137 + $0x7c0] sm:$0xff] %v2436
        %2693 = vst [vmem:[%s137 + $0x7c8] sm:$0xff] %v2437
        %2694 = vst [vmem:[%s137 + $0x7d0] sm:$0xff] %v2438
        %2695 = vst [vmem:[%s137 + $0x7d8] sm:$0xff] %v2439
        %2696 = vst [vmem:[%s137 + $0x7e0] sm:$0xff] %v2440
        %2697 = vst [vmem:[%s137 + $0x7e8] sm:$0xff] %v2441
        %2698 = vst [vmem:[%s137 + $0x7f0] sm:$0xff] %v2442
        %2699 = vst [vmem:[%s137 + $0x7f8] sm:$0xff] %v2443
        %s2700 = sand.u32 %s52, 1
        %s2701 = scalar_lea.sflag [#allocation4], %s2700
        %s2702 = sand.u32 %s52, 1
        %s2703 = smul.addr %s2702, 2048
        %s2704 = scalar_lea.vmem [#allocation5], %s2703
        // Predicated region
        $region29: #{tpu_custom_call.1} parent=23 // pred_check
          %p2705 = pneg %p62
        $region30: #{tpu_custom_call.1} parent=23 // pred_check_branch
          %2707 = sbr.rel (%p2705) target = $region32
        $region31: #{tpu_custom_call.1} parent=23 // pred_region
          %s2708 = smul.u32 4, %s18
          %2710 = vsyncadd %s2701, 0
          %s2711 = smul.addr %s2708, 64
          %s2712 = smul.addr %s2711, 8
          %s2713 = scalar_lea.hbm %s1, %s2712
          %s2714 = sshll.u32 %s2704, 4
          %s2715 = int_to_ptr.vmem [resolvable:$true] %s2714
          %s2716 = sshll.u32 %s2713, 4
          %s2717 = int_to_ptr.hbm [resolvable:$true] %s2716
          %2722 = dma.vmem_to_hbm [thread:$0]  %s2715, 32768, %s2717, %s2701, 8192, 8192, 512
        $region32: #{tpu_custom_call.1} parent=23 // pred_fallthru
          _
      $region24: #{tpu_custom_call.1} parent=5 // pred_fallthru
        _
      %p2723 = scmp.le.s32.totalorder 2, %s13
      // Predicated region
      $region33: #{tpu_custom_call.1} parent=5 // pred_check
        %p2724 = pneg %p2723
      $region34: #{tpu_custom_call.1} parent=5 // pred_check_branch
        %2726 = sbr.rel (%p2724) target = $region36
      $region35: #{tpu_custom_call.1} parent=5 // pred_region
        %s2727 = ssub.s32 %s13, 2
        // Predicated region
        $region37: #{tpu_custom_call.1} parent=35 // pred_check
          %p2728 = pneg %p68
        $region38: #{tpu_custom_call.1} parent=35 // pred_check_branch
          %2730 = sbr.rel (%p2728) target = $region40
        $region39: #{tpu_custom_call.1} parent=35 // pred_region
          %s2731 = sand.u32 %s53, 1
          %s2732 = scalar_lea.sflag [#allocation4], %s2731
          %s2733 = sand.u32 %s53, 1
          %s2734 = smul.addr %s2733, 2048
          %s2735 = scalar_lea.vmem [#allocation5], %s2734
          %2737 = dma.done %s2732, 32768
        $region40: #{tpu_custom_call.1} parent=35 // pred_fallthru
          _
      $region36: #{tpu_custom_call.1} parent=5 // pred_fallthru
        _
    $region6: #{tpu_custom_call.1} parent=1 // loop_footer
      %s17 = sadd.s32 1, %s13
    $region7: #{tpu_custom_call.1} parent=1 // loop_footer_branch
      %12 = sbr.rel target = $region3
    $region8: #{tpu_custom_call.1} parent=1 // loop_exit
      _
    %2738 = vsyncpa [#allocation3], 1
    %s2739 = scalar_lea.sflag [#allocation3], 1
    %2740 = vsyncpa %s2739, 1
    %2741 = vsyncpa [#allocation4], 1
    %s2742 = scalar_lea.sflag [#allocation4], 1
    %2743 = vsyncpa %s2742, 1

</llo_original>
